<compile_context>
chip_gen: v6e
topology: v6e:2x2x1
jax: 0.10.0
libtpu: 0.0.40
codegen_flags: <defaults>
</compile_context>

<pallas_src>
import functools

import jax
import jax.numpy as jnp
from jax import lax
from jax.experimental import pallas as pl
from jax.experimental.pallas import tpu as pltpu

_VMEM_LIMIT = 64 * 1024 * 1024


def _round_up(x, m):
    return (x + m - 1) // m * m


def _cdiv(a, b):
    return (a + b - 1) // b


# ----------------------------------------------------------------------------
# Generic tiled matmul: (M,K)@(K,N) + bias[N], optional fused ReLU.
# ----------------------------------------------------------------------------
def _mm_kernel(a_ref, b_ref, bias_ref, o_ref, *, relu):
    acc = jnp.dot(a_ref[...], b_ref[...], preferred_element_type=jnp.float32)
    acc = acc + bias_ref[...]
    if relu:
        acc = jnp.maximum(acc, 0.0)
    o_ref[...] = acc.astype(o_ref.dtype)


def pallas_matmul(a, b, bias=None, relu=False):
    M, K = a.shape
    K2, N = b.shape
    assert K == K2
    bias = jnp.zeros((N,), jnp.float32) if bias is None else bias.astype(jnp.float32)

    # Tiny / skinny GEMMs: Pallas dispatch + lane-sparse masked stores would dominate;
    # let XLA fuse them with neighbouring elementwise ops instead.
    if M < 1024 or N < 16:
        out = jnp.dot(a.astype(jnp.bfloat16), b.astype(jnp.bfloat16),
                      preferred_element_type=jnp.float32) + bias
        if relu:
            out = jnp.maximum(out, 0.0)
        return out.astype(jnp.bfloat16)

    a = a.astype(jnp.bfloat16)
    b = b.astype(jnp.bfloat16)
    bias2 = bias.reshape(1, N)

    if N <= 512:
        tn, Np = N, N
    else:
        tn = 256
        Np = _round_up(N, tn)
        b = jnp.pad(b, ((0, 0), (0, Np - N)))
        bias2 = jnp.pad(bias2, ((0, 0), (0, Np - N)))

    # Big M tiles amortize per-step overhead; keep >= 2 steps so both v7x cores get work.
    tm = 1024 if M >= 4096 else 512
    tm = min(tm, _round_up(M, 8))
    Mp = _round_up(M, tm)
    if Mp != M:
        a = jnp.pad(a, ((0, Mp - M), (0, 0)))

    out = pl.pallas_call(
        functools.partial(_mm_kernel, relu=relu),
        out_shape=jax.ShapeDtypeStruct((Mp, Np), jnp.bfloat16),
        grid=(Mp // tm, Np // tn),
        in_specs=[
            pl.BlockSpec((tm, K), lambda i, j: (i, 0)),
            pl.BlockSpec((K, tn), lambda i, j: (0, j)),
            pl.BlockSpec((1, tn), lambda i, j: (0, j)),
        ],
        out_specs=pl.BlockSpec((tm, tn), lambda i, j: (i, j)),
        compiler_params=pltpu.CompilerParams(
            dimension_semantics=("parallel", "parallel"),
            vmem_limit_bytes=_VMEM_LIMIT),
    )(a, b, bias2)
    if Mp != M or Np != N:
        out = out[:M, :N]
    return out


# ----------------------------------------------------------------------------
# Fused 3x3 stride-1 conv, row-chunked over the grid.
# ----------------------------------------------------------------------------
def _conv3x3_kernel(x_ref, w_ref, b_ref, *rest,
                    Wp, C, CH, in_relu, relu, fuse2, relu2, use_concat):
    if fuse2:
        w2_ref, b2_ref, o_ref = rest
    else:
        (o_ref,) = rest

    x = x_ref[0]                                       # (Lin, C) bf16, padded rows flattened
    if in_relu:
        x = jnp.maximum(x, 0)                          # hoisted: once per block, not per tap

    if use_concat:
        # im2col in VMEM: one (CH, 9C) @ (9C, Cout) MXU dot instead of 9 shallow K=C dots.
        cols = [x[kh * Wp + kw: kh * Wp + kw + CH, :]
                for kh in range(3) for kw in range(3)]
        patch = jnp.concatenate(cols, axis=1)          # (CH, 9C)
        acc = jnp.dot(patch, w_ref[...], preferred_element_type=jnp.float32)
    else:
        acc = None
        for t in range(9):
            off = (t // 3) * Wp + (t % 3)
            d = jnp.dot(x[off: off + CH, :], w_ref[t * C:(t + 1) * C, :],
                        preferred_element_type=jnp.float32)
            acc = d if acc is None else acc + d

    acc = acc + b_ref[...]
    if relu:
        acc = jnp.maximum(acc, 0.0)

    if fuse2:
        # trailing 1x1 conv (Cout -> 1) with a LANE-DENSE (1, CH) store:
        # (1, Cout) @ (CH, Cout)^T avoids a 1/128-dense masked column store.
        h = acc.astype(jnp.bfloat16)
        row = jnp.dot(w2_ref[...], h.T, preferred_element_type=jnp.float32)
        row = row + b2_ref[...]
        if relu2:
            row = jnp.maximum(row, 0.0)
        o_ref[0] = row.astype(o_ref.dtype)
    else:
        o_ref[0] = acc.astype(o_ref.dtype)


def conv3x3(x, w, b=None, relu=False, in_relu=False,
            w2=None, b2=None, relu2=False, row_chunk=None):
    """3x3 conv, stride 1, padding 1, NHWC.  w: (3,3,Cin,Cout).

    Optionally fuses input ReLU, output ReLU and a trailing 1x1 conv (Cout->1) + ReLU
    (output_conv2), the latter stored lane-dense as a (B, H, W) map."""
    B, H, W, C = x.shape
    Cout = w.shape[-1]
    Wp = W + 2
    fuse2 = w2 is not None
    use_concat = C <= 64

    if row_chunk is not None:
        TR = max(1, min(H, int(row_chunk)))
    else:
        per_row = 2 * C * (10 if use_concat else 1) + 6 * Cout
        budget = 12 * 1024 * 1024
        TR = max(1, min(H, (budget // per_row) // Wp))
    if fuse2:
        for d in range(8):                             # prefer CH % 8 == 0 for the transpose
            if TR + d <= H and ((TR + d) * Wp) % 8 == 0:
                TR += d
                break

    NC = _cdiv(H, TR)
    Hpad = NC * TR
    CH = TR * Wp
    Lin = (TR + 3) * Wp

    # One pad: 1-px zero halo + bottom rows so chunks tile evenly + one over-read row.
    xp = jnp.pad(x.astype(jnp.bfloat16), ((0, 0), (1, Hpad - H + 2), (1, 1), (0, 0)))
    if NC == 1:
        xch = xp[:, None]                              # (B, 1, TR+3, Wp, C)
    else:
        ridx = jnp.arange(NC)[:, None] * TR + jnp.arange(TR + 3)[None, :]
        xch = xp[:, ridx]                              # (B, NC, TR+3, Wp, C) (halo duplicated)
    xf = xch.reshape(B * NC, Lin, C)

    wf = w.reshape(9 * C, Cout).astype(jnp.bfloat16)
    bf = (jnp.zeros((Cout,), jnp.float32) if b is None
          else b.astype(jnp.float32)).reshape(1, Cout)

    inputs = [xf, wf, bf]
    in_specs = [
        pl.BlockSpec((1, Lin, C), lambda i: (i, 0, 0)),
        pl.BlockSpec((9 * C, Cout), lambda i: (0, 0)),
        pl.BlockSpec((1, Cout), lambda i: (0, 0)),
    ]
    if fuse2:
        assert w2.shape == (Cout, 1)
        inputs += [w2.astype(jnp.bfloat16).reshape(1, Cout),
                   b2.astype(jnp.float32).reshape(1, 1)]
        in_specs += [pl.BlockSpec((1, Cout), lambda i: (0, 0)),
                     pl.BlockSpec((1, 1), lambda i: (0, 0))]
        out_shape = jax.ShapeDtypeStruct((B * NC, 1, CH), jnp.float32)
        out_spec = pl.BlockSpec((1, 1, CH), lambda i: (i, 0, 0))
    else:
        out_shape = jax.ShapeDtypeStruct((B * NC, CH, Cout), jnp.bfloat16)
        out_spec = pl.BlockSpec((1, CH, Cout), lambda i: (i, 0, 0))

    y = pl.pallas_call(
        functools.partial(_conv3x3_kernel, Wp=Wp, C=C, CH=CH, in_relu=in_relu,
                          relu=relu, fuse2=fuse2, relu2=relu2, use_concat=use_concat),
        out_shape=out_shape,
        grid=(B * NC,),
        in_specs=in_specs,
        out_specs=out_spec,
        compiler_params=pltpu.CompilerParams(
            dimension_semantics=("parallel",),
            vmem_limit_bytes=_VMEM_LIMIT),
    )(*inputs)

    if fuse2:
        return y.reshape(B, Hpad, Wp)[:, :H, :W]       # (B, H, W) f32 depth map
    return y.reshape(B, Hpad, Wp, Cout)[:, :H, :W, :]


def conv3x3_s2(x, w, b=None, relu=False):
    """3x3 conv, stride 2, padding 1 (used once on a tiny tensor) via im2col."""
    B, H, W, C = x.shape
    xp = jnp.pad(x, ((0, 0), (1, 1), (1, 1), (0, 0)))
    Ho = (H + 2 - 3) // 2 + 1
    Wo = (W + 2 - 3) // 2 + 1
    cols = [xp[:, kh:kh + 2 * (Ho - 1) + 1:2, kw:kw + 2 * (Wo - 1) + 1:2, :]
            for kh in range(3) for kw in range(3)]
    p = jnp.concatenate(cols, axis=-1).reshape(B * Ho * Wo, 9 * C)
    y = pallas_matmul(p, w.reshape(9 * C, -1), b, relu)
    return y.reshape(B, Ho, Wo, -1)


def conv1x1(x, w, b=None, relu=False):
    B, H, W, C = x.shape
    y = pallas_matmul(x.reshape(B * H * W, C), w, b, relu)
    return y.reshape(B, H, W, -1)


def conv_transpose_sk(x, w, b, k):
    # ConvTranspose2d with kernel_size == stride == k, padding 0.  w: (Cin, k, k, Cout)
    B, H, W, C = x.shape
    Cout = w.shape[-1]
    y = pallas_matmul(x.reshape(B * H * W, C), w.reshape(C, k * k * Cout),
                      jnp.tile(b, k * k))
    y = y.reshape(B, H, W, k, k, Cout).transpose(0, 1, 3, 2, 4, 5)
    return y.reshape(B, H * k, W * k, Cout)


# ----------------------------------------------------------------------------
# Bilinear resize (align_corners=True), optional fused trailing 1x1 conv.
# ----------------------------------------------------------------------------
def _interp_matrix(out_size, in_size):
    if in_size == 1:
        return jnp.ones((out_size, 1), jnp.float32)
    if out_size == 1:
        return jax.nn.one_hot(jnp.zeros((1,), jnp.int32), in_size, dtype=jnp.float32)
    src = jnp.arange(out_size, dtype=jnp.float32) * (in_size - 1) / (out_size - 1)
    lo = jnp.clip(jnp.floor(src).astype(jnp.int32), 0, in_size - 1)
    hi = jnp.clip(lo + 1, 0, in_size - 1)
    wgt = src - lo.astype(jnp.float32)
    return ((1.0 - wgt)[:, None] * jax.nn.one_hot(lo, in_size, dtype=jnp.float32)
            + wgt[:, None] * jax.nn.one_hot(hi, in_size, dtype=jnp.float32))


def _resize_rows_kernel(ah_ref, x_ref, o_ref):
    o_ref[0] = jnp.dot(ah_ref[...], x_ref[0],
                       preferred_element_type=jnp.float32).astype(o_ref.dtype)


def _resize_cols_kernel(aw_ref, t_ref, *rest, fuse_out):
    if fuse_out:
        wo_ref, bo_ref, o_ref = rest
    else:
        (o_ref,) = rest
    t = t_ref[0]                                       # (TOh, W, C)
    aw = aw_ref[...]                                   # (Ow, W)
    awb = jnp.broadcast_to(aw[None], (t.shape[0],) + aw.shape)
    z = jnp.einsum('bow,bwc->boc', awb, t, preferred_element_type=jnp.float32)
    if fuse_out:
        wob = jnp.broadcast_to(wo_ref[...][None], (t.shape[0],) + wo_ref.shape)
        z = jnp.einsum('boc,bcd->bod', z.astype(jnp.bfloat16), wob,
                       preferred_element_type=jnp.float32) + bo_ref[...]
    o_ref[0] = z.astype(o_ref.dtype)


def bilinear_resize(x, out_h, out_w, w_out=None, b_out=None):
    B, H, W, C = x.shape
    x = x.astype(jnp.bfloat16)
    if (out_h, out_w) == (H, W) and w_out is None:
        return x

    TOh = 8
    Ohp = _round_up(out_h, TOh)
    Ah = jnp.pad(_interp_matrix(out_h, H), ((0, Ohp - out_h), (0, 0))).astype(jnp.bfloat16)
    Aw = _interp_matrix(out_w, W).astype(jnp.bfloat16)

    # Stage 1: H interpolation (2D MXU dot), chunked along the lane (W*C) dim.
    WC = W * C
    TW = W
    if H * WC * 2 > (4 << 20):
        tw = max(8, ((4 << 20) // (2 * C * H)) // 8 * 8)
        while tw >= 8 and (W % tw != 0 or (tw * C) % 128 != 0):
            tw -= 8
        if tw >= 8:
            TW = tw
    t = pl.pallas_call(
        _resize_rows_kernel,
        out_shape=jax.ShapeDtypeStruct((B, Ohp, WC), jnp.bfloat16),
        grid=(B, WC // (TW * C)),
        in_specs=[pl.BlockSpec((Ohp, H), lambda b, j: (0, 0)),
                  pl.BlockSpec((1, H, TW * C), lambda b, j: (b, 0, j))],
        out_specs=pl.BlockSpec((1, Ohp, TW * C), lambda b, j: (b, 0, j)),
        compiler_params=pltpu.CompilerParams(
            dimension_semantics=("parallel", "parallel"),
            vmem_limit_bytes=_VMEM_LIMIT),
    )(Ah, x.reshape(B, H, WC))
    t = t.reshape(B, Ohp, W, C)

    # Stage 2: W interpolation as a per-output-row batched (Ow,W)@(W,C) matmul
    # (no Kronecker weight); optionally fused with the fusion-block 1x1 out_conv.
    fuse_out = w_out is not None
    C2 = w_out.shape[-1] if fuse_out else C
    inputs = [Aw, t]
    in_specs = [pl.BlockSpec((out_w, W), lambda b, j: (0, 0)),
                pl.BlockSpec((1, TOh, W, C), lambda b, j: (b, j, 0, 0))]
    if fuse_out:
        bo = (jnp.zeros((C2,), jnp.float32) if b_out is None
              else b_out.astype(jnp.float32)).reshape(1, C2)
        inputs += [w_out.astype(jnp.bfloat16), bo]
        in_specs += [pl.BlockSpec((C, C2), lambda b, j: (0, 0)),
                     pl.BlockSpec((1, C2), lambda b, j: (0, 0))]
    out = pl.pallas_call(
        functools.partial(_resize_cols_kernel, fuse_out=fuse_out),
        out_shape=jax.ShapeDtypeStruct((B, Ohp, out_w, C2), jnp.bfloat16),
        grid=(B, Ohp // TOh),
        in_specs=in_specs,
        out_specs=pl.BlockSpec((1, TOh, out_w, C2), lambda b, j: (b, j, 0, 0)),
        compiler_params=pltpu.CompilerParams(
            dimension_semantics=("parallel", "parallel"),
            vmem_limit_bytes=_VMEM_LIMIT),
    )(*inputs)
    return out[:, :out_h]


# ----------------------------------------------------------------------------
# Module blocks
# ----------------------------------------------------------------------------
def residual_conv_unit(p, x):
    h = conv3x3(x, p['w1'], p['b1'], in_relu=True, relu=True)    # relu -> conv -> relu
    h = conv3x3(h, p['w2'], p['b2'])                             # conv
    return h + x


def fusion_block(p, x0, x1=None, size=None):
    out = x0 if x1 is None else x0 + residual_conv_unit(p['rcu1'], x1)
    out = residual_conv_unit(p['rcu2'], out)
    if size is None:
        size = (out.shape[1] * 2, out.shape[2] * 2)               # scale_factor=2
    # 1x1 out_conv fused into the resize kernel (applied after interpolation).
    return bilinear_resize(out, size[0], size[1], w_out=p['wo'], b_out=p['bo'])


def dpt_head_forward(params, out_features, patch_h, patch_w):
    outs = []
    for i in range(4):
        x = out_features[i][0]                                    # (B, N, C), use_clstoken=False
        B, N, C = x.shape
        x = x.reshape(B, patch_h, patch_w, C)                     # NHWC form of permute+reshape
        x = conv1x1(x, params['projects'][i]['w'], params['projects'][i]['b'])
        if i == 0:
            x = conv_transpose_sk(x, params['resize0']['w'], params['resize0']['b'], 4)
        elif i == 1:
            x = conv_transpose_sk(x, params['resize1']['w'], params['resize1']['b'], 2)
        elif i == 3:
            x = conv3x3_s2(x, params['resize3']['w'], params['resize3']['b'])
        outs.append(x)
    layer_1, layer_2, layer_3, layer_4 = outs

    l1 = conv3x3(layer_1, params['layer_rn'][0])                  # bias=False
    l2 = conv3x3(layer_2, params['layer_rn'][1])
    l3 = conv3x3(layer_3, params['layer_rn'][2])
    l4 = conv3x3(layer_4, params['layer_rn'][3])

    rf = params['refinenet']
    path_4 = fusion_block(rf[3], l4, None, size=(l3.shape[1], l3.shape[2]))
    path_3 = fusion_block(rf[2], path_4, l3, size=(l2.shape[1], l2.shape[2]))
    path_2 = fusion_block(rf[1], path_3, l2, size=(l1.shape[1], l1.shape[2]))
    path_1 = fusion_block(rf[0], path_2, l1)

    out = conv3x3(path_1, params['out_conv1']['w'], params['out_conv1']['b'])
    out_feat = bilinear_resize(out, int(patch_h * 14), int(patch_w * 14))
    # output_conv2: 3x3 -> ReLU -> 1x1 -> ReLU, ONE kernel with a lane-dense depth store.
    depth = conv3x3(out_feat, params['out_conv2_a']['w'], params['out_conv2_a']['b'],
                    relu=True, w2=params['out_conv2_b']['w'],
                    b2=params['out_conv2_b']['b'], relu2=True)
    rel_depth = depth.reshape(depth.shape[0], 1, depth.shape[1], depth.shape[2])

    # TODO(synk): NCHW/f32 conversion kept only to mirror the PyTorch return layout;
    # a fused consumer should take these directly in NHWC bf16.
    to_nchw = lambda t: jnp.transpose(t, (0, 3, 1, 2)).astype(jnp.float32)
    decoder_features = [to_nchw(path_4), to_nchw(path_3), to_nchw(path_2),
                        to_nchw(path_1), to_nchw(out_feat)]
    return rel_depth.astype(jnp.float32), decoder_features


dpt_head_forward_jit = jax.jit(dpt_head_forward, static_argnums=(2, 3))


# ----------------------------------------------------------------------------
# Deterministic synthetic parameters (no checkpoint).
# ----------------------------------------------------------------------------
class _KeyGen:
    def __init__(self, key):
        self.key = key

    def __call__(self):
        self.key, k = jax.random.split(self.key)
        return k


def init_params(key, in_channels, features, out_channels):
    kg = _KeyGen(key)
    w = lambda shape, s=0.05: s * jax.random.normal(kg(), shape, jnp.float32)

    p = {}
    p['projects'] = [{'w': w((in_channels, oc)), 'b': w((oc,), 0.01)} for oc in out_channels]
    p['resize0'] = {'w': w((out_channels[0], 4, 4, out_channels[0])),
                    'b': w((out_channels[0],), 0.01)}
    p['resize1'] = {'w': w((out_channels[1], 2, 2, out_channels[1])),
                    'b': w((out_channels[1],), 0.01)}
    p['resize3'] = {'w': w((3, 3, out_channels[3], out_channels[3])),
                    'b': w((out_channels[3],), 0.01)}
    p['layer_rn'] = [w((3, 3, oc, features)) for oc in out_channels]

    def rcu():
        return {'w1': w((3, 3, features, features)), 'b1': w((features,), 0.01),
                'w2': w((3, 3, features, features)), 'b2': w((features,), 0.01)}

    def fusion():
        return {'rcu1': rcu(), 'rcu2': rcu(),
                'wo': w((features, features)), 'bo': w((features,), 0.01)}

    p['refinenet'] = [fusion() for _ in range(4)]
    hf1, hf2 = features, 32
    p['out_conv1'] = {'w': w((3, 3, hf1, hf1 // 2)), 'b': w((hf1 // 2,), 0.01)}
    p['out_conv2_a'] = {'w': w((3, 3, hf1 // 2, hf2)), 'b': w((hf2,), 0.01)}
    p['out_conv2_b'] = {'w': w((hf2, 1)), 'b': w((1,), 0.01)}
    return p


# ----------------------------------------------------------------------------
if __name__ == "__main__":
    key = jax.random.PRNGKey(0)

    # ---- kernel self-tests --------------------------------------------------
    k1, k2, k3, key = jax.random.split(key, 4)
    a = 0.1 * jax.random.normal(k1, (1536, 96), jnp.float32)
    bm = 0.1 * jax.random.normal(k2, (96, 192), jnp.float32)
    bias = 0.01 * jax.random.normal(k3, (192,), jnp.float32)
    got = pallas_matmul(a, bm, bias, relu=True).astype(jnp.float32)
    ref = jnp.maximum(a.astype(jnp.bfloat16).astype(jnp.float32)
                      @ bm.astype(jnp.bfloat16).astype(jnp.float32) + bias, 0.0)
    assert jnp.allclose(got, ref, atol=3e-2, rtol=3e-2), "matmul kernel mismatch"

    kx, kw, kb, key = jax.random.split(key, 4)
    xt = 0.5 * jax.random.normal(kx, (2, 10, 12, 16), jnp.float32)
    wt = 0.1 * jax.random.normal(kw, (3, 3, 16, 16), jnp.float32)
    bt = 0.01 * jax.random.normal(kb, (16,), jnp.float32)
    y_full = conv3x3(xt, wt, bt, relu=True, in_relu=True).astype(jnp.float32)
    y_chunk = conv3x3(xt, wt, bt, relu=True, in_relu=True, row_chunk=3).astype(jnp.float32)
    xbf = jnp.maximum(xt, 0.0).astype(jnp.bfloat16).astype(jnp.float32)
    refc = lax.conv_general_dilated(xbf, wt.astype(jnp.bfloat16).astype(jnp.float32),
                                    (1, 1), ((1, 1), (1, 1)),
                                    dimension_numbers=('NHWC', 'HWIO', 'NHWC'))
    refc = jnp.maximum(refc + bt, 0.0)
    assert jnp.allclose(y_full, refc, atol=3e-2, rtol=3e-2), "conv3x3 mismatch"
    assert jnp.allclose(y_chunk, refc, atol=3e-2, rtol=3e-2), "chunked conv3x3 mismatch"

    kx, kw, key = jax.random.split(key, 3)
    xt2 = 0.5 * jax.random.normal(kx, (1, 6, 6, 96), jnp.float32)
    wt2 = 0.05 * jax.random.normal(kw, (3, 3, 96, 32), jnp.float32)
    y2 = conv3x3(xt2, wt2).astype(jnp.float32)
    ref2 = lax.conv_general_dilated(xt2.astype(jnp.bfloat16).astype(jnp.float32),
                                    wt2.astype(jnp.bfloat16).astype(jnp.float32),
                                    (1, 1), ((1, 1), (1, 1)),
                                    dimension_numbers=('NHWC', 'HWIO', 'NHWC'))
    assert jnp.allclose(y2, ref2, atol=3e-2, rtol=3e-2), "deep-channel conv3x3 mismatch"

    kx, key = jax.random.split(key)
    xr = jax.random.normal(kx, (2, 8, 12, 16), jnp.float32)
    yr = bilinear_resize(xr, 13, 20).astype(jnp.float32)
    refr = jnp.einsum('oh,bhwc->bowc', _interp_matrix(13, 8),
                      xr.astype(jnp.bfloat16).astype(jnp.float32))
    refr = jnp.einsum('pw,bowc->bopc', _interp_matrix(20, 12), refr)
    assert jnp.allclose(yr, refr, atol=1e-1, rtol=1e-1), "resize mismatch"

    # ---- full DPT head forward ----------------------------------------------
    B = 2
    in_channels = 32
    features = 16
    out_channels = [16, 16, 16, 16]
    patch_h = patch_w = 4
    n_tokens = patch_h * patch_w

    k_params, k_in = jax.random.split(key)
    params = init_params(k_params, in_channels, features, out_channels)
    in_keys = jax.random.split(k_in, 4)
    out_features = [
        (jax.random.normal(in_keys[i], (B, n_tokens, in_channels), jnp.float32),)
        for i in range(4)
    ]

    rel_depth, decoder_features = dpt_head_forward_jit(params, out_features, patch_h, patch_w)
    jax.block_until_ready(rel_depth)
    jax.block_until_ready(decoder_features)

    assert rel_depth.shape == (B, 1, patch_h * 14, patch_w * 14), rel_depth.shape
    assert decoder_features[0].shape == (B, features, patch_h, patch_w)             # path_4
    assert decoder_features[3].shape == (B, features, patch_h * 8, patch_w * 8)     # path_1
    assert decoder_features[4].shape == (B, features // 2, patch_h * 14, patch_w * 14)
    assert bool(jnp.all(jnp.isfinite(rel_depth)))
    print("KERNEL_OK")
</pallas_src>

<mosaic_0001>
module attributes {stable_mosaic.version = 11 : i64} {
  func.func @_mm_kernel(%arg0: i32, %arg1: i32, %arg2: memref<512x96xbf16, #tpu.memory_space<vmem>>, %arg3: memref<96x192xbf16, #tpu.memory_space<vmem>>, %arg4: memref<1x192xf32, #tpu.memory_space<vmem>>, %arg5: memref<512x192xbf16, #tpu.memory_space<vmem>>) attributes {dimension_semantics = [#tpu.dimension_semantics<parallel>, #tpu.dimension_semantics<parallel>], iteration_bounds = array<i64: 3, 1>, scalar_prefetch = 0 : i64, scratch_operands = 0 : i64, tpu.core_type = #tpu.core_type<tc>, window_params = [{transform_indices = @transform_0, window_bounds = array<i64: 512, 96>}, {transform_indices = @transform_1, window_bounds = array<i64: 96, 192>}, {transform_indices = @transform_2, window_bounds = array<i64: 1, 192>}, {transform_indices = @transform_3, window_bounds = array<i64: 512, 192>}]} {
    %c0 = arith.constant 0 : index
    %c0_0 = arith.constant 0 : index
    %0 = vector.load %arg2[%c0, %c0_0] : memref<512x96xbf16, #tpu.memory_space<vmem>>, vector<512x96xbf16>
    %c0_1 = arith.constant 0 : index
    %c0_2 = arith.constant 0 : index
    %1 = vector.load %arg3[%c0_1, %c0_2] : memref<96x192xbf16, #tpu.memory_space<vmem>>, vector<96x192xbf16>
    %cst = arith.constant dense<0.000000e+00> : vector<512x192xf32>
    %2 = tpu.matmul %0, %1, %cst {dimension_numbers = #tpu.dot_dimension_numbers<[1], [0], [0], [1], [0, 0, 1, 1], [], []>} : vector<512x96xbf16>, vector<96x192xbf16>, vector<512x192xf32> -> vector<512x192xf32>
    %c0_3 = arith.constant 0 : index
    %c0_4 = arith.constant 0 : index
    %3 = vector.load %arg4[%c0_3, %c0_4] : memref<1x192xf32, #tpu.memory_space<vmem>>, vector<1x192xf32>
    %4 = vector.broadcast %3 : vector<1x192xf32> to vector<512x192xf32>
    %5 = arith.addf %2, %4 : vector<512x192xf32>
    %cst_5 = arith.constant 0.000000e+00 : f32
    %6 = vector.broadcast %cst_5 : f32 to vector<512x192xf32>
    %7 = arith.maximumf %5, %6 : vector<512x192xf32>
    %8 = arith.truncf %7 : vector<512x192xf32> to vector<512x192xbf16>
    %c0_6 = arith.constant 0 : index
    %c0_7 = arith.constant 0 : index
    %9 = vector.load %arg5[%c0_6, %c0_7] : memref<512x192xbf16, #tpu.memory_space<vmem>>, vector<512x192xbf16>
    tpu.vector_store %arg5[%c0_6, %c0_7], %8 {strides = array<i32>} : memref<512x192xbf16, #tpu.memory_space<vmem>>, vector<512x192xbf16>,
    return
  }
  func.func @transform_0(%arg0: i32, %arg1: i32) -> (i32, i32) {
    %c0_i32 = arith.constant 0 : i32
    %c0_i32_0 = arith.constant 0 : i32
    return %arg0, %c0_i32 : i32, i32
  }
  func.func @transform_1(%arg0: i32, %arg1: i32) -> (i32, i32) {
    %c0_i32 = arith.constant 0 : i32
    %c0_i32_0 = arith.constant 0 : i32
    return %c0_i32, %arg1 : i32, i32
  }
  func.func @transform_2(%arg0: i32, %arg1: i32) -> (i32, i32) {
    %c0_i32 = arith.constant 0 : i32
    %c0_i32_0 = arith.constant 0 : i32
    return %c0_i32, %arg1 : i32, i32
  }
  func.func @transform_3(%arg0: i32, %arg1: i32) -> (i32, i32) {
    %c0_i32 = arith.constant 0 : i32
    return %arg0, %arg1 : i32, i32
  }
}

</mosaic_0001>

<llo_original>
// kernel: tpu_custom_call.1
$region0: #{tpu_custom_call.1}
  #allocation0 [shape = 'u32[]', space=smem, size = 0x4, offset = 0x4, fixed_abs, tag = 'smem constant byte address 0x4 - core index']
  #allocation1 [shape = 'u32[144,128]{1,0:T(1,128)}', space=vmem, size = 0x12000, scoped, tag = 'internal scratch']
  %s0 = inlined_call_operand.vmem [shape: bf16[1536,96], index: 0, kind: input, shape index: {}]
  %s1 = inlined_call_operand.vmem [shape: bf16[96,192], index: 1, kind: input, shape index: {}]
  %s2 = inlined_call_operand.vmem [shape: f32[1,192], index: 2, kind: input, shape index: {}]
  %s3 = inlined_call_operand.vmem [shape: bf16[1536,192], index: 3, kind: output, shape index: {}]
  %s4 = sld [smem:[#allocation0]]
  $region45: #{tpu_custom_call.1} parent=0
    _
  %s6 = ssub.s32 1, %s4
  %s7 = scalar_select 0, %s6, %s4
  loop: start=0, step=1, limit=5
  $region2: #{tpu_custom_call.1} parent=0 // loop_pre_header
    _
  $region3: #{tpu_custom_call.1} parent=0 // loop_header
    %s9 = sphi 0, %s13
    %p10 = scmp.ge.s32.totalorder %s9, 5
    %s16 = sphi 0, %s28
    %s17 = sphi 0, %s24
    %s18 = sphi 0, %s16
    %s19 = sphi 0, %s17
    %s20 = sphi 0, %s18
    %s21 = sphi 0, %s19
    %s31 = sphi 0, %s33
    %s34 = sphi 0, %s31
    %s35 = sphi 0, %s34
    %s51 = sphi 0, %s35
    %s57 = sphi 0, %s59
    %s60 = sphi 0, %s57
    %s61 = sphi 0, %s60
    %s77 = sphi 0, %s61
    %s83 = sphi 0, %s85
    %s86 = sphi 0, %s83
    %s87 = sphi 0, %s86
    %s103 = sphi 0, %s87
    %s111 = sphi 0, %s113
    %s114 = sphi 0, %s111
    %s115 = sphi 0, %s114
    %s131 = sphi 0, %s115
  $region4: #{tpu_custom_call.1} parent=0 // loop_header_branch
    %12 = sbr.rel (%p10) target = $region8
  $region5: #{tpu_custom_call.1} parent=0 // loop_body
    %s14 = ssub.s32 %s9, 1
    %s15 = ssub.s32 %s9, 2
    %s22 = sadd.s32 1, %s17
    %p23 = scmp.ge.s32.totalorder %s22, 1
    %s24 = scalar_select %p23, 0, %s22
    %s25 = sadd.s32 1, %s16
    %s26 = scalar_select %p23, %s25, %s16
    %p27 = scmp.ge.s32.totalorder %s26, 3
    %s28 = scalar_select %p27, 0, %s26
    %s29 = ssub.s32 %s16, %s28
    %p30 = scmp.eq.s32.totalorder %s29, 0
    %s32 = sadd.s32 %s31, 1
    %s33 = scalar_select %p30, %s31, %s32
    %p36 = pneg %p30
    %p37 = scmp.eq.s32.totalorder %s9, 2
    %p38 = por %p36, %p37
    %p39 = scmp.ne.s32.totalorder %s31, %s34
    %p40 = scmp.eq.s32.totalorder %s9, 0
    %p41 = por %p39, %p40
    %p42 = scmp.ne.s32.totalorder %s31, %s34
    %p43 = scmp.eq.s32.totalorder %s14, 2
    %p44 = por %p42, %p43
    %p45 = scmp.ne.s32.totalorder %s34, %s35
    %p46 = scmp.eq.s32.totalorder %s14, 0
    %p47 = por %p45, %p46
    %p48 = scmp.ne.s32.totalorder %s34, %s35
    %p49 = scmp.eq.s32.totalorder %s15, 2
    %p50 = por %p48, %p49
    %p52 = scmp.ne.s32.totalorder %s35, %s51
    %p53 = scmp.eq.s32.totalorder %s15, 0
    %p54 = por %p52, %p53
    %s55 = ssub.s32 %s17, %s24
    %p56 = scmp.eq.s32.totalorder %s55, 0
    %s58 = sadd.s32 %s57, 1
    %s59 = scalar_select %p56, %s57, %s58
    %p62 = pneg %p56
    %p63 = scmp.eq.s32.totalorder %s9, 2
    %p64 = por %p62, %p63
    %p65 = scmp.ne.s32.totalorder %s57, %s60
    %p66 = scmp.eq.s32.totalorder %s9, 0
    %p67 = por %p65, %p66
    %p68 = scmp.ne.s32.totalorder %s57, %s60
    %p69 = scmp.eq.s32.totalorder %s14, 2
    %p70 = por %p68, %p69
    %p71 = scmp.ne.s32.totalorder %s60, %s61
    %p72 = scmp.eq.s32.totalorder %s14, 0
    %p73 = por %p71, %p72
    %p74 = scmp.ne.s32.totalorder %s60, %s61
    %p75 = scmp.eq.s32.totalorder %s15, 2
    %p76 = por %p74, %p75
    %p78 = scmp.ne.s32.totalorder %s61, %s77
    %p79 = scmp.eq.s32.totalorder %s15, 0
    %p80 = por %p78, %p79
    %s81 = ssub.s32 %s17, %s24
    %p82 = scmp.eq.s32.totalorder %s81, 0
    %s84 = sadd.s32 %s83, 1
    %s85 = scalar_select %p82, %s83, %s84
    %p88 = pneg %p82
    %p89 = scmp.eq.s32.totalorder %s9, 2
    %p90 = por %p88, %p89
    %p91 = scmp.ne.s32.totalorder %s83, %s86
    %p92 = scmp.eq.s32.totalorder %s9, 0
    %p93 = por %p91, %p92
    %p94 = scmp.ne.s32.totalorder %s83, %s86
    %p95 = scmp.eq.s32.totalorder %s14, 2
    %p96 = por %p94, %p95
    %p97 = scmp.ne.s32.totalorder %s86, %s87
    %p98 = scmp.eq.s32.totalorder %s14, 0
    %p99 = por %p97, %p98
    %p100 = scmp.ne.s32.totalorder %s86, %s87
    %p101 = scmp.eq.s32.totalorder %s15, 2
    %p102 = por %p100, %p101
    %p104 = scmp.ne.s32.totalorder %s87, %s103
    %p105 = scmp.eq.s32.totalorder %s15, 0
    %p106 = por %p104, %p105
    %s107 = ssub.s32 %s16, %s28
    %s108 = ssub.s32 %s17, %s24
    %s109 = sor.u32 %s107, %s108
    %p110 = scmp.eq.s32.totalorder %s109, 0
    %s112 = sadd.s32 %s111, 1
    %s113 = scalar_select %p110, %s111, %s112
    %p116 = pneg %p110
    %p117 = scmp.eq.s32.totalorder %s9, 2
    %p118 = por %p116, %p117
    %p119 = scmp.ne.s32.totalorder %s111, %s114
    %p120 = scmp.eq.s32.totalorder %s9, 0
    %p121 = por %p119, %p120
    %p122 = scmp.ne.s32.totalorder %s111, %s114
    %p123 = scmp.eq.s32.totalorder %s14, 2
    %p124 = por %p122, %p123
    %p125 = scmp.ne.s32.totalorder %s114, %s115
    %p126 = scmp.eq.s32.totalorder %s14, 0
    %p127 = por %p125, %p126
    %p128 = scmp.ne.s32.totalorder %s114, %s115
    %p129 = scmp.eq.s32.totalorder %s15, 2
    %p130 = por %p128, %p129
    %p132 = scmp.ne.s32.totalorder %s115, %s131
    %p133 = scmp.eq.s32.totalorder %s15, 0
    %p134 = por %p132, %p133
    %p135 = scmp.le.s32.totalorder 1, %s9
    %p136 = scmp.lt.s32.totalorder %s9, 4
    %p137 = pnand %p135, %p136
    %p138 = pneg %p137
    // Predicated region
    $region9: #{tpu_custom_call.1} parent=5 // pred_check
      _
    $region10: #{tpu_custom_call.1} parent=5 // pred_check_branch
      %140 = sbr.rel (%p137) target = $region12
    $region11: #{tpu_custom_call.1} parent=5 // pred_region
      %s141 = ssub.s32 %s9, 1
      // Predicated region
      $region13: #{tpu_custom_call.1} parent=11 // pred_check
        %p142 = pneg %p73
      $region14: #{tpu_custom_call.1} parent=11 // pred_check_branch
        %144 = sbr.rel (%p142) target = $region16
      $region15: #{tpu_custom_call.1} parent=11 // pred_region
        %s145 = smul.u32 2, %s19
        %p146 = scmp.lt.s32.totalorder %s145, 1
        %s147 = scalar_select %p146, %s145, 1
        %s148 = smul.addr %s147, 4
        %s149 = scalar_lea.vmem %s1, %s148
        %s150 = smul.u32 2, %s19
      $region16: #{tpu_custom_call.1} parent=11 // pred_fallthru
        _
      // Predicated region
      $region17: #{tpu_custom_call.1} parent=11 // pred_check
        %p151 = pneg %p99
      $region18: #{tpu_custom_call.1} parent=11 // pred_check_branch
        %153 = sbr.rel (%p151) target = $region20
      $region19: #{tpu_custom_call.1} parent=11 // pred_region
        %s154 = smul.u32 2, %s19
        %p155 = scmp.lt.s32.totalorder %s154, 1
        %s156 = scalar_select %p155, %s154, 1
        %s157 = scalar_lea.vmem %s2, %s156
        %s158 = smul.u32 2, %s19
      $region20: #{tpu_custom_call.1} parent=11 // pred_fallthru
        _
    $region12: #{tpu_custom_call.1} parent=5 // pred_fallthru
      _
    %p159 = scmp.lt.s32.totalorder %s9, 3
    // Predicated region
    $region21: #{tpu_custom_call.1} parent=5 // pred_check
      %p160 = pneg %p159
    $region22: #{tpu_custom_call.1} parent=5 // pred_check_branch
      %162 = sbr.rel (%p160) target = $region24
    $region23: #{tpu_custom_call.1} parent=5 // pred_region
      // Predicated region
      $region25: #{tpu_custom_call.1} parent=23 // pred_check
        %p163 = pneg %p41
      $region26: #{tpu_custom_call.1} parent=23 // pred_check_branch
        %165 = sbr.rel (%p163) target = $region28
      $region27: #{tpu_custom_call.1} parent=23 // pred_region
        %s166 = smul.u32 64, %s16
        %p167 = scmp.lt.s32.totalorder %s166, 191
        %s168 = scalar_select %p167, %s166, 191
        %s169 = smul.addr %s168, 4
        %s170 = scalar_lea.vmem %s0, %s169
        %s171 = smul.u32 64, %s16
      $region28: #{tpu_custom_call.1} parent=23 // pred_fallthru
        _
    $region24: #{tpu_custom_call.1} parent=5 // pred_fallthru
      _
    %p172 = scmp.le.s32.totalorder 1, %s9
    %p173 = scmp.lt.s32.totalorder %s9, 4
    %p174 = pnand %p172, %p173
    %p175 = pneg %p174
    // Predicated region
    $region29: #{tpu_custom_call.1} parent=5 // pred_check
      _
    $region30: #{tpu_custom_call.1} parent=5 // pred_check_branch
      %177 = sbr.rel (%p174) target = $region32
    $region31: #{tpu_custom_call.1} parent=5 // pred_region
      %s178 = ssub.s32 %s9, 1
      %s179 = smul.u32 64, %s18
      %p180 = scmp.lt.s32.totalorder %s179, 191
      %s181 = scalar_select %p180, %s179, 191
      %s182 = smul.addr %s181, 4
      %s183 = scalar_lea.vmem %s0, %s182
      %p184 = pneg %p47
      %p185 = pneg %p44
      %s186 = smul.u32 2, %s19
      %p187 = scmp.lt.s32.totalorder %s186, 1
      %s188 = scalar_select %p187, %s186, 1
      %s189 = smul.addr %s188, 4
      %s190 = scalar_lea.vmem %s1, %s189
      %p191 = pneg %p73
      %p192 = pneg %p70
      %s193 = smul.u32 2, %s19
      %p194 = scmp.lt.s32.totalorder %s193, 1
      %s195 = scalar_select %p194, %s193, 1
      %s196 = scalar_lea.vmem %s2, %s195
      %p197 = pneg %p99
      %p198 = pneg %p96
      %p199 = pneg %p127
      %p200 = pneg %p124
      %s201 = smul.u32 64, %s18
      %s202 = smul.u32 2, %s19
      %p203 = scmp.lt.s32.totalorder %s201, 191
      %s204 = scalar_select %p203, %s201, 191
      %p205 = scmp.lt.s32.totalorder %s202, 1
      %s206 = scalar_select %p205, %s202, 1
      %s207 = smul.addr %s204, 2
      %s208 = sadd.s32 %s206, %s207
      %s209 = smul.addr %s208, 4
      %s210 = scalar_lea.vmem %s3, %s209
      %s211 = smul.u32 64, %s18
      %p212 = scmp.lt.s32.totalorder %s211, 191
      %s213 = scalar_select %p212, %s211, 191
      %s214 = smul.addr %s213, 4
      %s215 = scalar_lea.vmem %s0, %s214
      %s216 = smul.u32 64, %s18
      %s217 = smul.u32 2, %s19
      %p218 = scmp.lt.s32.totalorder %s217, 1
      %s219 = scalar_select %p218, %s217, 1
      %s220 = smul.addr %s219, 4
      %s221 = scalar_lea.vmem %s1, %s220
      %s222 = smul.u32 2, %s19
      %s223 = smul.u32 2, %s19
      %p224 = scmp.lt.s32.totalorder %s223, 1
      %s225 = scalar_select %p224, %s223, 1
      %s226 = scalar_lea.vmem %s2, %s225
      %s227 = smul.u32 2, %s19
      %s228 = smul.u32 64, %s18
      %s229 = smul.u32 2, %s19
      %p230 = scmp.lt.s32.totalorder %s228, 191
      %s231 = scalar_select %p230, %s228, 191
      %p232 = scmp.lt.s32.totalorder %s229, 1
      %s233 = scalar_select %p232, %s229, 1
      %s234 = smul.addr %s231, 2
      %s235 = sadd.s32 %s233, %s234
      %s236 = smul.addr %s235, 4
      %s237 = scalar_lea.vmem %s3, %s236
      %s238 = smul.u32 64, %s18
      %s239 = smul.u32 2, %s19
      %v241 = vld [vmem:[%s215] sm:$0xf]
      %v242 = vld [vmem:[%s215 + $0x4] sm:$0xf]
      %v243 = vld [vmem:[%s215 + $0x8] sm:$0xf]
      %v244 = vld [vmem:[%s215 + $0xc] sm:$0xf]
      %v245 = vld [vmem:[%s215 + $0x10] sm:$0xf]
      %v246 = vld [vmem:[%s215 + $0x14] sm:$0xf]
      %v247 = vld [vmem:[%s215 + $0x18] sm:$0xf]
      %v248 = vld [vmem:[%s215 + $0x1c] sm:$0xf]
      %v249 = vld [vmem:[%s215 + $0x20] sm:$0xf]
      %v250 = vld [vmem:[%s215 + $0x24] sm:$0xf]
      %v251 = vld [vmem:[%s215 + $0x28] sm:$0xf]
      %v252 = vld [vmem:[%s215 + $0x2c] sm:$0xf]
      %v253 = vld [vmem:[%s215 + $0x30] sm:$0xf]
      %v254 = vld [vmem:[%s215 + $0x34] sm:$0xf]
      %v255 = vld [vmem:[%s215 + $0x38] sm:$0xf]
      %v256 = vld [vmem:[%s215 + $0x3c] sm:$0xf]
      %v257 = vld [vmem:[%s215 + $0x40] sm:$0xf]
      %v258 = vld [vmem:[%s215 + $0x44] sm:$0xf]
      %v259 = vld [vmem:[%s215 + $0x48] sm:$0xf]
      %v260 = vld [vmem:[%s215 + $0x4c] sm:$0xf]
      %v261 = vld [vmem:[%s215 + $0x50] sm:$0xf]
      %v262 = vld [vmem:[%s215 + $0x54] sm:$0xf]
      %v263 = vld [vmem:[%s215 + $0x58] sm:$0xf]
      %v264 = vld [vmem:[%s215 + $0x5c] sm:$0xf]
      %v265 = vld [vmem:[%s215 + $0x60] sm:$0xf]
      %v266 = vld [vmem:[%s215 + $0x64] sm:$0xf]
      %v267 = vld [vmem:[%s215 + $0x68] sm:$0xf]
      %v268 = vld [vmem:[%s215 + $0x6c] sm:$0xf]
      %v269 = vld [vmem:[%s215 + $0x70] sm:$0xf]
      %v270 = vld [vmem:[%s215 + $0x74] sm:$0xf]
      %v271 = vld [vmem:[%s215 + $0x78] sm:$0xf]
      %v272 = vld [vmem:[%s215 + $0x7c] sm:$0xf]
      %v273 = vld [vmem:[%s215 + $0x80] sm:$0xf]
      %v274 = vld [vmem:[%s215 + $0x84] sm:$0xf]
      %v275 = vld [vmem:[%s215 + $0x88] sm:$0xf]
      %v276 = vld [vmem:[%s215 + $0x8c] sm:$0xf]
      %v277 = vld [vmem:[%s215 + $0x90] sm:$0xf]
      %v278 = vld [vmem:[%s215 + $0x94] sm:$0xf]
      %v279 = vld [vmem:[%s215 + $0x98] sm:$0xf]
      %v280 = vld [vmem:[%s215 + $0x9c] sm:$0xf]
      %v281 = vld [vmem:[%s215 + $0xa0] sm:$0xf]
      %v282 = vld [vmem:[%s215 + $0xa4] sm:$0xf]
      %v283 = vld [vmem:[%s215 + $0xa8] sm:$0xf]
      %v284 = vld [vmem:[%s215 + $0xac] sm:$0xf]
      %v285 = vld [vmem:[%s215 + $0xb0] sm:$0xf]
      %v286 = vld [vmem:[%s215 + $0xb4] sm:$0xf]
      %v287 = vld [vmem:[%s215 + $0xb8] sm:$0xf]
      %v288 = vld [vmem:[%s215 + $0xbc] sm:$0xf]
      %v289 = vld [vmem:[%s215 + $0xc0] sm:$0xf]
      %v290 = vld [vmem:[%s215 + $0xc4] sm:$0xf]
      %v291 = vld [vmem:[%s215 + $0xc8] sm:$0xf]
      %v292 = vld [vmem:[%s215 + $0xcc] sm:$0xf]
      %v293 = vld [vmem:[%s215 + $0xd0] sm:$0xf]
      %v294 = vld [vmem:[%s215 + $0xd4] sm:$0xf]
      %v295 = vld [vmem:[%s215 + $0xd8] sm:$0xf]
      %v296 = vld [vmem:[%s215 + $0xdc] sm:$0xf]
      %v297 = vld [vmem:[%s215 + $0xe0] sm:$0xf]
      %v298 = vld [vmem:[%s215 + $0xe4] sm:$0xf]
      %v299 = vld [vmem:[%s215 + $0xe8] sm:$0xf]
      %v300 = vld [vmem:[%s215 + $0xec] sm:$0xf]
      %v301 = vld [vmem:[%s215 + $0xf0] sm:$0xf]
      %v302 = vld [vmem:[%s215 + $0xf4] sm:$0xf]
      %v303 = vld [vmem:[%s215 + $0xf8] sm:$0xf]
      %v304 = vld [vmem:[%s215 + $0xfc] sm:$0xf]
      %v305 = vld [vmem:[%s221] sm:$0xff]
      %v306 = vld [vmem:[%s221 + $0x8] sm:$0xff]
      %v307 = vld [vmem:[%s221 + $0x10] sm:$0xff]
      %v308 = vld [vmem:[%s221 + $0x18] sm:$0xff]
      %v309 = vld [vmem:[%s221 + $0x20] sm:$0xff]
      %v310 = vld [vmem:[%s221 + $0x28] sm:$0xff]
      %v311 = vld [vmem:[%s221 + $0x30] sm:$0xff]
      %v312 = vld [vmem:[%s221 + $0x38] sm:$0xff]
      %v313 = vld [vmem:[%s221 + $0x40] sm:$0xff]
      %v314 = vld [vmem:[%s221 + $0x48] sm:$0xff]
      %v315 = vld [vmem:[%s221 + $0x50] sm:$0xff]
      %v316 = vld [vmem:[%s221 + $0x58] sm:$0xff]
      %v317 = vld [vmem:[%s226] sm:$0x3]
      %v319 = vlaneseq
      %v320 = vshrl.u32 %v319, 7
      %v321 = vsub.s32 0, %v320
      %v322 = vrot.slane %v317, %v321
      %v323 = vlaneseq
      %v324 = vshrl.u32 %v323, 7
      %v325 = vsub.s32 1, %v324
      %v326 = vrot.slane %v317, %v325
      %v393 = vunpack.c.l.b16 %v241
      %v394 = vunpack.c.l.b16 %v242
      %v395 = vunpack.c.l.b16 %v243
      %v396 = vunpack.c.l.b16 %v244
      %v397 = vunpack.c.l.b16 %v245
      %v398 = vunpack.c.l.b16 %v246
      %v399 = vunpack.c.l.b16 %v247
      %v400 = vunpack.c.l.b16 %v248
      %v401 = vunpack.c.l.b16 %v249
      %v402 = vunpack.c.l.b16 %v250
      %v403 = vunpack.c.l.b16 %v251
      %v404 = vunpack.c.l.b16 %v252
      %v405 = vunpack.c.l.b16 %v253
      %v406 = vunpack.c.l.b16 %v254
      %v407 = vunpack.c.l.b16 %v255
      %v408 = vunpack.c.l.b16 %v256
      %v409 = vunpack.c.l.b16 %v257
      %v410 = vunpack.c.l.b16 %v258
      %v411 = vunpack.c.l.b16 %v259
      %v412 = vunpack.c.l.b16 %v260
      %v413 = vunpack.c.l.b16 %v261
      %v414 = vunpack.c.l.b16 %v262
      %v415 = vunpack.c.l.b16 %v263
      %v416 = vunpack.c.l.b16 %v264
      %v417 = vunpack.c.l.b16 %v265
      %v418 = vunpack.c.l.b16 %v266
      %v419 = vunpack.c.l.b16 %v267
      %v420 = vunpack.c.l.b16 %v268
      %v421 = vunpack.c.l.b16 %v269
      %v422 = vunpack.c.l.b16 %v270
      %v423 = vunpack.c.l.b16 %v271
      %v424 = vunpack.c.l.b16 %v272
      %v425 = vunpack.c.l.b16 %v273
      %v426 = vunpack.c.l.b16 %v274
      %v427 = vunpack.c.l.b16 %v275
      %v428 = vunpack.c.l.b16 %v276
      %v429 = vunpack.c.l.b16 %v277
      %v430 = vunpack.c.l.b16 %v278
      %v431 = vunpack.c.l.b16 %v279
      %v432 = vunpack.c.l.b16 %v280
      %v433 = vunpack.c.l.b16 %v281
      %v434 = vunpack.c.l.b16 %v282
      %v435 = vunpack.c.l.b16 %v283
      %v436 = vunpack.c.l.b16 %v284
      %v437 = vunpack.c.l.b16 %v285
      %v438 = vunpack.c.l.b16 %v286
      %v439 = vunpack.c.l.b16 %v287
      %v440 = vunpack.c.l.b16 %v288
      %v441 = vunpack.c.l.b16 %v289
      %v442 = vunpack.c.l.b16 %v290
      %v443 = vunpack.c.l.b16 %v291
      %v444 = vunpack.c.l.b16 %v292
      %v445 = vunpack.c.l.b16 %v293
      %v446 = vunpack.c.l.b16 %v294
      %v447 = vunpack.c.l.b16 %v295
      %v448 = vunpack.c.l.b16 %v296
      %v449 = vunpack.c.l.b16 %v297
      %v450 = vunpack.c.l.b16 %v298
      %v451 = vunpack.c.l.b16 %v299
      %v452 = vunpack.c.l.b16 %v300
      %v453 = vunpack.c.l.b16 %v301
      %v454 = vunpack.c.l.b16 %v302
      %v455 = vunpack.c.l.b16 %v303
      %v456 = vunpack.c.l.b16 %v304
      %v457 = vpack.c.b16 %v394, %v393
      %v458 = vpack.c.b16 %v396, %v395
      %v459 = vpack.c.b16 %v398, %v397
      %v460 = vpack.c.b16 %v400, %v399
      %v461 = vpack.c.b16 %v402, %v401
      %v462 = vpack.c.b16 %v404, %v403
      %v463 = vpack.c.b16 %v406, %v405
      %v464 = vpack.c.b16 %v408, %v407
      %v465 = vpack.c.b16 %v410, %v409
      %v466 = vpack.c.b16 %v412, %v411
      %v467 = vpack.c.b16 %v414, %v413
      %v468 = vpack.c.b16 %v416, %v415
      %v469 = vpack.c.b16 %v418, %v417
      %v470 = vpack.c.b16 %v420, %v419
      %v471 = vpack.c.b16 %v422, %v421
      %v472 = vpack.c.b16 %v424, %v423
      %v473 = vpack.c.b16 %v426, %v425
      %v474 = vpack.c.b16 %v428, %v427
      %v475 = vpack.c.b16 %v430, %v429
      %v476 = vpack.c.b16 %v432, %v431
      %v477 = vpack.c.b16 %v434, %v433
      %v478 = vpack.c.b16 %v436, %v435
      %v479 = vpack.c.b16 %v438, %v437
      %v480 = vpack.c.b16 %v440, %v439
      %v481 = vpack.c.b16 %v442, %v441
      %v482 = vpack.c.b16 %v444, %v443
      %v483 = vpack.c.b16 %v446, %v445
      %v484 = vpack.c.b16 %v448, %v447
      %v485 = vpack.c.b16 %v450, %v449
      %v486 = vpack.c.b16 %v452, %v451
      %v487 = vpack.c.b16 %v454, %v453
      %v488 = vpack.c.b16 %v456, %v455
      %v501 = vunpack.c.l.b16 %v305
      %v502 = vunpack.c.h.b16 %v305
      %v503 = vunpack.c.l.b16 %v306
      %v504 = vunpack.c.h.b16 %v306
      %v505 = vunpack.c.l.b16 %v307
      %v506 = vunpack.c.h.b16 %v307
      %v507 = vunpack.c.l.b16 %v308
      %v508 = vunpack.c.h.b16 %v308
      %v509 = vunpack.c.l.b16 %v309
      %v510 = vunpack.c.h.b16 %v309
      %v511 = vunpack.c.l.b16 %v310
      %v512 = vunpack.c.h.b16 %v310
      %v513 = vunpack.c.l.b16 %v311
      %v514 = vunpack.c.h.b16 %v311
      %v515 = vunpack.c.l.b16 %v312
      %v516 = vunpack.c.h.b16 %v312
      %v517 = vunpack.c.l.b16 %v313
      %v518 = vunpack.c.h.b16 %v313
      %v519 = vunpack.c.l.b16 %v314
      %v520 = vunpack.c.h.b16 %v314
      %v521 = vunpack.c.l.b16 %v315
      %v522 = vunpack.c.h.b16 %v315
      %v523 = vunpack.c.l.b16 %v316
      %v524 = vunpack.c.h.b16 %v316
      %v525 = vpack.c.b16 %v503, %v501
      %v526 = vpack.c.b16 %v504, %v502
      %v527 = vpack.c.b16 %v507, %v505
      %v528 = vpack.c.b16 %v508, %v506
      %v529 = vpack.c.b16 %v511, %v509
      %v530 = vpack.c.b16 %v512, %v510
      %v531 = vpack.c.b16 %v515, %v513
      %v532 = vpack.c.b16 %v516, %v514
      %v533 = vpack.c.b16 %v519, %v517
      %v534 = vpack.c.b16 %v520, %v518
      %v535 = vpack.c.b16 %v523, %v521
      %v536 = vpack.c.b16 %v524, %v522
      %vm549 = vcmask 785408
      %v551 = vsel %vm549, %v457, 0
      %v554 = vsel %vm549, %v458, 0
      %v557 = vsel %vm549, %v459, 0
      %v560 = vsel %vm549, %v460, 0
      %v563 = vsel %vm549, %v461, 0
      %v566 = vsel %vm549, %v462, 0
      %v569 = vsel %vm549, %v463, 0
      %v572 = vsel %vm549, %v464, 0
      %v575 = vsel %vm549, %v465, 0
      %v578 = vsel %vm549, %v466, 0
      %v581 = vsel %vm549, %v467, 0
      %v584 = vsel %vm549, %v468, 0
      %v587 = vsel %vm549, %v469, 0
      %v590 = vsel %vm549, %v470, 0
      %v593 = vsel %vm549, %v471, 0
      %v596 = vsel %vm549, %v472, 0
      %v599 = vsel %vm549, %v473, 0
      %v602 = vsel %vm549, %v474, 0
      %v605 = vsel %vm549, %v475, 0
      %v608 = vsel %vm549, %v476, 0
      %v611 = vsel %vm549, %v477, 0
      %v614 = vsel %vm549, %v478, 0
      %v617 = vsel %vm549, %v479, 0
      %v620 = vsel %vm549, %v480, 0
      %v623 = vsel %vm549, %v481, 0
      %v626 = vsel %vm549, %v482, 0
      %v629 = vsel %vm549, %v483, 0
      %v632 = vsel %vm549, %v484, 0
      %v635 = vsel %vm549, %v485, 0
      %v638 = vsel %vm549, %v486, 0
      %v641 = vsel %vm549, %v487, 0
      %v644 = vsel %vm549, %v488, 0
      %646 = vmatprep.subr.bf16.mxu0 0
      %647 = vmatpush1.bf16.msra.mxu0 0
      %648 = vmatprep.subr.bf16.mxu0 0
      %649 = vmatpush1.bf16.msra.mxu0 0
      %650 = vmatprep.subr.bf16.mxu0 %v536
      %651 = vmatpush1.bf16.msra.mxu0 %v535
      %652 = vmatprep.subr.bf16.mxu0 %v534
      %653 = vmatpush1.bf16.msra.mxu0 %v533
      %654 = vmatprep.subr.bf16.mxu0 %v532
      %655 = vmatpush1.bf16.msra.mxu0 %v531
      %656 = vmatprep.subr.bf16.mxu0 %v530
      %657 = vmatpush1.bf16.msra.mxu0 %v529
      %658 = vmatprep.subr.bf16.mxu0 %v528
      %659 = vmatpush1.bf16.msra.mxu0 %v527
      %660 = vmatprep.subr.bf16.mxu0 %v526
      %661 = vmatpush1.bf16.msra.mxu0 %v525
      %662 = vmatprep.subr.bf16.mxu0 0
      %663 = vmatpush2.bf16.msra.mxu0 0
      %664 = vmatprep.subr.bf16.mxu0 0
      %665 = vmatpush2.bf16.msra.mxu0 0
      %666 = vmatprep.subr.bf16.mxu0 0
      %667 = vmatpush2.bf16.msra.mxu0 0
      %668 = vmatprep.subr.bf16.mxu0 0
      %669 = vmatpush2.bf16.msra.mxu0 0
      %670 = vmatprep.subr.bf16.mxu0 0
      %671 = vmatpush2.bf16.msra.mxu0 0
      %672 = vmatprep.subr.bf16.mxu0 0
      %673 = vmatpush2.bf16.msra.mxu0 0
      %674 = vmatprep.subr.bf16.mxu0 0
      %675 = vmatpush2.bf16.msra.mxu0 0
      %676 = vmatprep.subr.bf16.mxu0 0
      %677 = vmatpush2.bf16.msra.mxu0 0
      %678 = vmatprep.mubr.bf16.mxu0 0
      %679 = vmatmul.mubr.bf16.gmra.mxu0 %v551
      %v680 = vpop.f32.mrf.mxu0
      %v681 = vadd.f32 %v322, %v680
      %v682 = vpop.f32.mrf.mxu0
      %v683 = vadd.f32 %v326, %v682
      %v684 = vpop.f32.mrf.mxu0
      %v685 = vadd.f32 %v322, %v684
      %v686 = vpop.f32.mrf.mxu0
      %v687 = vadd.f32 %v326, %v686
      %688 = vmatprep.mubr.bf16.mxu0 0
      %689 = vmatmul.mubr.bf16.gmra.mxu0 %v554
      %v690 = vpop.f32.mrf.mxu0
      %v691 = vadd.f32 %v322, %v690
      %v692 = vpop.f32.mrf.mxu0
      %v693 = vadd.f32 %v326, %v692
      %v694 = vpop.f32.mrf.mxu0
      %v695 = vadd.f32 %v322, %v694
      %v696 = vpop.f32.mrf.mxu0
      %v697 = vadd.f32 %v326, %v696
      %698 = vmatprep.mubr.bf16.mxu0 0
      %699 = vmatmul.mubr.bf16.gmra.mxu0 %v557
      %v700 = vpop.f32.mrf.mxu0
      %v701 = vadd.f32 %v322, %v700
      %v702 = vpop.f32.mrf.mxu0
      %v703 = vadd.f32 %v326, %v702
      %v704 = vpop.f32.mrf.mxu0
      %v705 = vadd.f32 %v322, %v704
      %v706 = vpop.f32.mrf.mxu0
      %v707 = vadd.f32 %v326, %v706
      %708 = vmatprep.mubr.bf16.mxu0 0
      %709 = vmatmul.mubr.bf16.gmra.mxu0 %v560
      %v710 = vpop.f32.mrf.mxu0
      %v711 = vadd.f32 %v322, %v710
      %v712 = vpop.f32.mrf.mxu0
      %v713 = vadd.f32 %v326, %v712
      %v714 = vpop.f32.mrf.mxu0
      %v715 = vadd.f32 %v322, %v714
      %v716 = vpop.f32.mrf.mxu0
      %v717 = vadd.f32 %v326, %v716
      %718 = vmatprep.mubr.bf16.mxu0 0
      %719 = vmatmul.mubr.bf16.gmra.mxu0 %v563
      %v720 = vpop.f32.mrf.mxu0
      %v721 = vadd.f32 %v322, %v720
      %v722 = vpop.f32.mrf.mxu0
      %v723 = vadd.f32 %v326, %v722
      %v724 = vpop.f32.mrf.mxu0
      %v725 = vadd.f32 %v322, %v724
      %v726 = vpop.f32.mrf.mxu0
      %v727 = vadd.f32 %v326, %v726
      %728 = vmatprep.mubr.bf16.mxu0 0
      %729 = vmatmul.mubr.bf16.gmra.mxu0 %v566
      %v730 = vpop.f32.mrf.mxu0
      %v731 = vadd.f32 %v322, %v730
      %v732 = vpop.f32.mrf.mxu0
      %v733 = vadd.f32 %v326, %v732
      %v734 = vpop.f32.mrf.mxu0
      %v735 = vadd.f32 %v322, %v734
      %v736 = vpop.f32.mrf.mxu0
      %v737 = vadd.f32 %v326, %v736
      %738 = vmatprep.mubr.bf16.mxu0 0
      %739 = vmatmul.mubr.bf16.gmra.mxu0 %v569
      %v740 = vpop.f32.mrf.mxu0
      %v741 = vadd.f32 %v322, %v740
      %v742 = vpop.f32.mrf.mxu0
      %v743 = vadd.f32 %v326, %v742
      %v744 = vpop.f32.mrf.mxu0
      %v745 = vadd.f32 %v322, %v744
      %v746 = vpop.f32.mrf.mxu0
      %v747 = vadd.f32 %v326, %v746
      %748 = vmatprep.mubr.bf16.mxu0 0
      %749 = vmatmul.mubr.bf16.gmra.mxu0 %v572
      %v750 = vpop.f32.mrf.mxu0
      %v751 = vadd.f32 %v322, %v750
      %v752 = vpop.f32.mrf.mxu0
      %v753 = vadd.f32 %v326, %v752
      %v754 = vpop.f32.mrf.mxu0
      %v755 = vadd.f32 %v322, %v754
      %v756 = vpop.f32.mrf.mxu0
      %v757 = vadd.f32 %v326, %v756
      %758 = vmatprep.mubr.bf16.mxu0 0
      %759 = vmatmul.mubr.bf16.gmra.mxu0 %v575
      %v760 = vpop.f32.mrf.mxu0
      %v761 = vadd.f32 %v322, %v760
      %v762 = vpop.f32.mrf.mxu0
      %v763 = vadd.f32 %v326, %v762
      %v764 = vpop.f32.mrf.mxu0
      %v765 = vadd.f32 %v322, %v764
      %v766 = vpop.f32.mrf.mxu0
      %v767 = vadd.f32 %v326, %v766
      %768 = vmatprep.mubr.bf16.mxu0 0
      %769 = vmatmul.mubr.bf16.gmra.mxu0 %v578
      %v770 = vpop.f32.mrf.mxu0
      %v771 = vadd.f32 %v322, %v770
      %v772 = vpop.f32.mrf.mxu0
      %v773 = vadd.f32 %v326, %v772
      %v774 = vpop.f32.mrf.mxu0
      %v775 = vadd.f32 %v322, %v774
      %v776 = vpop.f32.mrf.mxu0
      %v777 = vadd.f32 %v326, %v776
      %778 = vmatprep.mubr.bf16.mxu0 0
      %779 = vmatmul.mubr.bf16.gmra.mxu0 %v581
      %v780 = vpop.f32.mrf.mxu0
      %v781 = vadd.f32 %v322, %v780
      %v782 = vpop.f32.mrf.mxu0
      %v783 = vadd.f32 %v326, %v782
      %v784 = vpop.f32.mrf.mxu0
      %v785 = vadd.f32 %v322, %v784
      %v786 = vpop.f32.mrf.mxu0
      %v787 = vadd.f32 %v326, %v786
      %788 = vmatprep.mubr.bf16.mxu0 0
      %789 = vmatmul.mubr.bf16.gmra.mxu0 %v584
      %v790 = vpop.f32.mrf.mxu0
      %v791 = vadd.f32 %v322, %v790
      %v792 = vpop.f32.mrf.mxu0
      %v793 = vadd.f32 %v326, %v792
      %v794 = vpop.f32.mrf.mxu0
      %v795 = vadd.f32 %v322, %v794
      %v796 = vpop.f32.mrf.mxu0
      %v797 = vadd.f32 %v326, %v796
      %798 = vmatprep.mubr.bf16.mxu0 0
      %799 = vmatmul.mubr.bf16.gmra.mxu0 %v587
      %v800 = vpop.f32.mrf.mxu0
      %v801 = vadd.f32 %v322, %v800
      %v802 = vpop.f32.mrf.mxu0
      %v803 = vadd.f32 %v326, %v802
      %v804 = vpop.f32.mrf.mxu0
      %v805 = vadd.f32 %v322, %v804
      %v806 = vpop.f32.mrf.mxu0
      %v807 = vadd.f32 %v326, %v806
      %808 = vmatprep.mubr.bf16.mxu0 0
      %809 = vmatmul.mubr.bf16.gmra.mxu0 %v590
      %v810 = vpop.f32.mrf.mxu0
      %v811 = vadd.f32 %v322, %v810
      %v812 = vpop.f32.mrf.mxu0
      %v813 = vadd.f32 %v326, %v812
      %v814 = vpop.f32.mrf.mxu0
      %v815 = vadd.f32 %v322, %v814
      %v816 = vpop.f32.mrf.mxu0
      %v817 = vadd.f32 %v326, %v816
      %818 = vmatprep.mubr.bf16.mxu0 0
      %819 = vmatmul.mubr.bf16.gmra.mxu0 %v593
      %v820 = vpop.f32.mrf.mxu0
      %v821 = vadd.f32 %v322, %v820
      %v822 = vpop.f32.mrf.mxu0
      %v823 = vadd.f32 %v326, %v822
      %v824 = vpop.f32.mrf.mxu0
      %v825 = vadd.f32 %v322, %v824
      %v826 = vpop.f32.mrf.mxu0
      %v827 = vadd.f32 %v326, %v826
      %828 = vmatprep.mubr.bf16.mxu0 0
      %829 = vmatmul.mubr.bf16.gmra.mxu0 %v596
      %v830 = vpop.f32.mrf.mxu0
      %v831 = vadd.f32 %v322, %v830
      %v832 = vpop.f32.mrf.mxu0
      %v833 = vadd.f32 %v326, %v832
      %v834 = vpop.f32.mrf.mxu0
      %v835 = vadd.f32 %v322, %v834
      %v836 = vpop.f32.mrf.mxu0
      %v837 = vadd.f32 %v326, %v836
      %838 = vmatprep.mubr.bf16.mxu0 0
      %839 = vmatmul.mubr.bf16.gmra.mxu0 %v599
      %v840 = vpop.f32.mrf.mxu0
      %v841 = vadd.f32 %v322, %v840
      %v842 = vpop.f32.mrf.mxu0
      %v843 = vadd.f32 %v326, %v842
      %v844 = vpop.f32.mrf.mxu0
      %v845 = vadd.f32 %v322, %v844
      %v846 = vpop.f32.mrf.mxu0
      %v847 = vadd.f32 %v326, %v846
      %848 = vmatprep.mubr.bf16.mxu0 0
      %849 = vmatmul.mubr.bf16.gmra.mxu0 %v602
      %v850 = vpop.f32.mrf.mxu0
      %v851 = vadd.f32 %v322, %v850
      %v852 = vpop.f32.mrf.mxu0
      %v853 = vadd.f32 %v326, %v852
      %v854 = vpop.f32.mrf.mxu0
      %v855 = vadd.f32 %v322, %v854
      %v856 = vpop.f32.mrf.mxu0
      %v857 = vadd.f32 %v326, %v856
      %858 = vmatprep.mubr.bf16.mxu0 0
      %859 = vmatmul.mubr.bf16.gmra.mxu0 %v605
      %v860 = vpop.f32.mrf.mxu0
      %v861 = vadd.f32 %v322, %v860
      %v862 = vpop.f32.mrf.mxu0
      %v863 = vadd.f32 %v326, %v862
      %v864 = vpop.f32.mrf.mxu0
      %v865 = vadd.f32 %v322, %v864
      %v866 = vpop.f32.mrf.mxu0
      %v867 = vadd.f32 %v326, %v866
      %868 = vmatprep.mubr.bf16.mxu0 0
      %869 = vmatmul.mubr.bf16.gmra.mxu0 %v608
      %v870 = vpop.f32.mrf.mxu0
      %v871 = vadd.f32 %v322, %v870
      %v872 = vpop.f32.mrf.mxu0
      %v873 = vadd.f32 %v326, %v872
      %v874 = vpop.f32.mrf.mxu0
      %v875 = vadd.f32 %v322, %v874
      %v876 = vpop.f32.mrf.mxu0
      %v877 = vadd.f32 %v326, %v876
      %878 = vmatprep.mubr.bf16.mxu0 0
      %879 = vmatmul.mubr.bf16.gmra.mxu0 %v611
      %v880 = vpop.f32.mrf.mxu0
      %v881 = vadd.f32 %v322, %v880
      %v882 = vpop.f32.mrf.mxu0
      %v883 = vadd.f32 %v326, %v882
      %v884 = vpop.f32.mrf.mxu0
      %v885 = vadd.f32 %v322, %v884
      %v886 = vpop.f32.mrf.mxu0
      %v887 = vadd.f32 %v326, %v886
      %888 = vmatprep.mubr.bf16.mxu0 0
      %889 = vmatmul.mubr.bf16.gmra.mxu0 %v614
      %v890 = vpop.f32.mrf.mxu0
      %v891 = vadd.f32 %v322, %v890
      %v892 = vpop.f32.mrf.mxu0
      %v893 = vadd.f32 %v326, %v892
      %v894 = vpop.f32.mrf.mxu0
      %v895 = vadd.f32 %v322, %v894
      %v896 = vpop.f32.mrf.mxu0
      %v897 = vadd.f32 %v326, %v896
      %898 = vmatprep.mubr.bf16.mxu0 0
      %899 = vmatmul.mubr.bf16.gmra.mxu0 %v617
      %v900 = vpop.f32.mrf.mxu0
      %v901 = vadd.f32 %v322, %v900
      %v902 = vpop.f32.mrf.mxu0
      %v903 = vadd.f32 %v326, %v902
      %v904 = vpop.f32.mrf.mxu0
      %v905 = vadd.f32 %v322, %v904
      %v906 = vpop.f32.mrf.mxu0
      %v907 = vadd.f32 %v326, %v906
      %908 = vmatprep.mubr.bf16.mxu0 0
      %909 = vmatmul.mubr.bf16.gmra.mxu0 %v620
      %v910 = vpop.f32.mrf.mxu0
      %v911 = vadd.f32 %v322, %v910
      %v912 = vpop.f32.mrf.mxu0
      %v913 = vadd.f32 %v326, %v912
      %v914 = vpop.f32.mrf.mxu0
      %v915 = vadd.f32 %v322, %v914
      %v916 = vpop.f32.mrf.mxu0
      %v917 = vadd.f32 %v326, %v916
      %918 = vmatprep.mubr.bf16.mxu0 0
      %919 = vmatmul.mubr.bf16.gmra.mxu0 %v623
      %v920 = vpop.f32.mrf.mxu0
      %v921 = vadd.f32 %v322, %v920
      %v922 = vpop.f32.mrf.mxu0
      %v923 = vadd.f32 %v326, %v922
      %v924 = vpop.f32.mrf.mxu0
      %v925 = vadd.f32 %v322, %v924
      %v926 = vpop.f32.mrf.mxu0
      %v927 = vadd.f32 %v326, %v926
      %928 = vmatprep.mubr.bf16.mxu0 0
      %929 = vmatmul.mubr.bf16.gmra.mxu0 %v626
      %v930 = vpop.f32.mrf.mxu0
      %v931 = vadd.f32 %v322, %v930
      %v932 = vpop.f32.mrf.mxu0
      %v933 = vadd.f32 %v326, %v932
      %v934 = vpop.f32.mrf.mxu0
      %v935 = vadd.f32 %v322, %v934
      %v936 = vpop.f32.mrf.mxu0
      %v937 = vadd.f32 %v326, %v936
      %938 = vmatprep.mubr.bf16.mxu0 0
      %939 = vmatmul.mubr.bf16.gmra.mxu0 %v629
      %v940 = vpop.f32.mrf.mxu0
      %v941 = vadd.f32 %v322, %v940
      %v942 = vpop.f32.mrf.mxu0
      %v943 = vadd.f32 %v326, %v942
      %v944 = vpop.f32.mrf.mxu0
      %v945 = vadd.f32 %v322, %v944
      %v946 = vpop.f32.mrf.mxu0
      %v947 = vadd.f32 %v326, %v946
      %948 = vmatprep.mubr.bf16.mxu0 0
      %949 = vmatmul.mubr.bf16.gmra.mxu0 %v632
      %v950 = vpop.f32.mrf.mxu0
      %v951 = vadd.f32 %v322, %v950
      %v952 = vpop.f32.mrf.mxu0
      %v953 = vadd.f32 %v326, %v952
      %v954 = vpop.f32.mrf.mxu0
      %v955 = vadd.f32 %v322, %v954
      %v956 = vpop.f32.mrf.mxu0
      %v957 = vadd.f32 %v326, %v956
      %958 = vmatprep.mubr.bf16.mxu0 0
      %959 = vmatmul.mubr.bf16.gmra.mxu0 %v635
      %v960 = vpop.f32.mrf.mxu0
      %v961 = vadd.f32 %v322, %v960
      %v962 = vpop.f32.mrf.mxu0
      %v963 = vadd.f32 %v326, %v962
      %v964 = vpop.f32.mrf.mxu0
      %v965 = vadd.f32 %v322, %v964
      %v966 = vpop.f32.mrf.mxu0
      %v967 = vadd.f32 %v326, %v966
      %968 = vmatprep.mubr.bf16.mxu0 0
      %969 = vmatmul.mubr.bf16.gmra.mxu0 %v638
      %v970 = vpop.f32.mrf.mxu0
      %v971 = vadd.f32 %v322, %v970
      %v972 = vpop.f32.mrf.mxu0
      %v973 = vadd.f32 %v326, %v972
      %v974 = vpop.f32.mrf.mxu0
      %v975 = vadd.f32 %v322, %v974
      %v976 = vpop.f32.mrf.mxu0
      %v977 = vadd.f32 %v326, %v976
      %978 = vmatprep.mubr.bf16.mxu0 0
      %979 = vmatmul.mubr.bf16.gmra.mxu0 %v641
      %v980 = vpop.f32.mrf.mxu0
      %v981 = vadd.f32 %v322, %v980
      %v982 = vpop.f32.mrf.mxu0
      %v983 = vadd.f32 %v326, %v982
      %v984 = vpop.f32.mrf.mxu0
      %v985 = vadd.f32 %v322, %v984
      %v986 = vpop.f32.mrf.mxu0
      %v987 = vadd.f32 %v326, %v986
      %988 = vmatprep.mubr.bf16.mxu0 0
      %989 = vmatmul.mubr.bf16.gmra.mxu0 %v644
      %v990 = vpop.f32.mrf.mxu0
      %v991 = vadd.f32 %v322, %v990
      %v992 = vpop.f32.mrf.mxu0
      %v993 = vadd.f32 %v326, %v992
      %v994 = vpop.f32.mrf.mxu0
      %v995 = vadd.f32 %v322, %v994
      %v996 = vpop.f32.mrf.mxu0
      %v997 = vadd.f32 %v326, %v996
      %998 = vdwg.mxu0
      %v999 = vmax.f32 %v681, 0.0
      %v1000 = vmax.f32 %v683, 0.0
      %v1001 = vmax.f32 %v685, 0.0
      %v1002 = vmax.f32 %v687, 0.0
      %v1003 = vmax.f32 %v691, 0.0
      %v1004 = vmax.f32 %v693, 0.0
      %v1005 = vmax.f32 %v695, 0.0
      %v1006 = vmax.f32 %v697, 0.0
      %v1007 = vmax.f32 %v701, 0.0
      %v1008 = vmax.f32 %v703, 0.0
      %v1009 = vmax.f32 %v705, 0.0
      %v1010 = vmax.f32 %v707, 0.0
      %v1011 = vmax.f32 %v711, 0.0
      %v1012 = vmax.f32 %v713, 0.0
      %v1013 = vmax.f32 %v715, 0.0
      %v1014 = vmax.f32 %v717, 0.0
      %v1015 = vmax.f32 %v721, 0.0
      %v1016 = vmax.f32 %v723, 0.0
      %v1017 = vmax.f32 %v725, 0.0
      %v1018 = vmax.f32 %v727, 0.0
      %v1019 = vmax.f32 %v731, 0.0
      %v1020 = vmax.f32 %v733, 0.0
      %v1021 = vmax.f32 %v735, 0.0
      %v1022 = vmax.f32 %v737, 0.0
      %v1023 = vmax.f32 %v741, 0.0
      %v1024 = vmax.f32 %v743, 0.0
      %v1025 = vmax.f32 %v745, 0.0
      %v1026 = vmax.f32 %v747, 0.0
      %v1027 = vmax.f32 %v751, 0.0
      %v1028 = vmax.f32 %v753, 0.0
      %v1029 = vmax.f32 %v755, 0.0
      %v1030 = vmax.f32 %v757, 0.0
      %v1031 = vmax.f32 %v761, 0.0
      %v1032 = vmax.f32 %v763, 0.0
      %v1033 = vmax.f32 %v765, 0.0
      %v1034 = vmax.f32 %v767, 0.0
      %v1035 = vmax.f32 %v771, 0.0
      %v1036 = vmax.f32 %v773, 0.0
      %v1037 = vmax.f32 %v775, 0.0
      %v1038 = vmax.f32 %v777, 0.0
      %v1039 = vmax.f32 %v781, 0.0
      %v1040 = vmax.f32 %v783, 0.0
      %v1041 = vmax.f32 %v785, 0.0
      %v1042 = vmax.f32 %v787, 0.0
      %v1043 = vmax.f32 %v791, 0.0
      %v1044 = vmax.f32 %v793, 0.0
      %v1045 = vmax.f32 %v795, 0.0
      %v1046 = vmax.f32 %v797, 0.0
      %v1047 = vmax.f32 %v801, 0.0
      %v1048 = vmax.f32 %v803, 0.0
      %v1049 = vmax.f32 %v805, 0.0
      %v1050 = vmax.f32 %v807, 0.0
      %v1051 = vmax.f32 %v811, 0.0
      %v1052 = vmax.f32 %v813, 0.0
      %v1053 = vmax.f32 %v815, 0.0
      %v1054 = vmax.f32 %v817, 0.0
      %v1055 = vmax.f32 %v821, 0.0
      %v1056 = vmax.f32 %v823, 0.0
      %v1057 = vmax.f32 %v825, 0.0
      %v1058 = vmax.f32 %v827, 0.0
      %v1059 = vmax.f32 %v831, 0.0
      %v1060 = vmax.f32 %v833, 0.0
      %v1061 = vmax.f32 %v835, 0.0
      %v1062 = vmax.f32 %v837, 0.0
      %v1063 = vmax.f32 %v841, 0.0
      %v1064 = vmax.f32 %v843, 0.0
      %v1065 = vmax.f32 %v845, 0.0
      %v1066 = vmax.f32 %v847, 0.0
      %v1067 = vmax.f32 %v851, 0.0
      %v1068 = vmax.f32 %v853, 0.0
      %v1069 = vmax.f32 %v855, 0.0
      %v1070 = vmax.f32 %v857, 0.0
      %v1071 = vmax.f32 %v861, 0.0
      %v1072 = vmax.f32 %v863, 0.0
      %v1073 = vmax.f32 %v865, 0.0
      %v1074 = vmax.f32 %v867, 0.0
      %v1075 = vmax.f32 %v871, 0.0
      %v1076 = vmax.f32 %v873, 0.0
      %v1077 = vmax.f32 %v875, 0.0
      %v1078 = vmax.f32 %v877, 0.0
      %v1079 = vmax.f32 %v881, 0.0
      %v1080 = vmax.f32 %v883, 0.0
      %v1081 = vmax.f32 %v885, 0.0
      %v1082 = vmax.f32 %v887, 0.0
      %v1083 = vmax.f32 %v891, 0.0
      %v1084 = vmax.f32 %v893, 0.0
      %v1085 = vmax.f32 %v895, 0.0
      %v1086 = vmax.f32 %v897, 0.0
      %v1087 = vmax.f32 %v901, 0.0
      %v1088 = vmax.f32 %v903, 0.0
      %v1089 = vmax.f32 %v905, 0.0
      %v1090 = vmax.f32 %v907, 0.0
      %v1091 = vmax.f32 %v911, 0.0
      %v1092 = vmax.f32 %v913, 0.0
      %v1093 = vmax.f32 %v915, 0.0
      %v1094 = vmax.f32 %v917, 0.0
      %v1095 = vmax.f32 %v921, 0.0
      %v1096 = vmax.f32 %v923, 0.0
      %v1097 = vmax.f32 %v925, 0.0
      %v1098 = vmax.f32 %v927, 0.0
      %v1099 = vmax.f32 %v931, 0.0
      %v1100 = vmax.f32 %v933, 0.0
      %v1101 = vmax.f32 %v935, 0.0
      %v1102 = vmax.f32 %v937, 0.0
      %v1103 = vmax.f32 %v941, 0.0
      %v1104 = vmax.f32 %v943, 0.0
      %v1105 = vmax.f32 %v945, 0.0
      %v1106 = vmax.f32 %v947, 0.0
      %v1107 = vmax.f32 %v951, 0.0
      %v1108 = vmax.f32 %v953, 0.0
      %v1109 = vmax.f32 %v955, 0.0
      %v1110 = vmax.f32 %v957, 0.0
      %v1111 = vmax.f32 %v961, 0.0
      %v1112 = vmax.f32 %v963, 0.0
      %v1113 = vmax.f32 %v965, 0.0
      %v1114 = vmax.f32 %v967, 0.0
      %v1115 = vmax.f32 %v971, 0.0
      %v1116 = vmax.f32 %v973, 0.0
      %v1117 = vmax.f32 %v975, 0.0
      %v1118 = vmax.f32 %v977, 0.0
      %v1119 = vmax.f32 %v981, 0.0
      %v1120 = vmax.f32 %v983, 0.0
      %v1121 = vmax.f32 %v985, 0.0
      %v1122 = vmax.f32 %v987, 0.0
      %v1123 = vmax.f32 %v991, 0.0
      %v1124 = vmax.f32 %v993, 0.0
      %v1125 = vmax.f32 %v995, 0.0
      %v1126 = vmax.f32 %v997, 0.0
      %v1127 = vpack.c.bf16 %v1001, %v999
      %v1128 = vpack.c.bf16 %v1002, %v1000
      %v1129 = vpack.c.bf16 %v1005, %v1003
      %v1130 = vpack.c.bf16 %v1006, %v1004
      %v1131 = vpack.c.bf16 %v1009, %v1007
      %v1132 = vpack.c.bf16 %v1010, %v1008
      %v1133 = vpack.c.bf16 %v1013, %v1011
      %v1134 = vpack.c.bf16 %v1014, %v1012
      %v1135 = vpack.c.bf16 %v1017, %v1015
      %v1136 = vpack.c.bf16 %v1018, %v1016
      %v1137 = vpack.c.bf16 %v1021, %v1019
      %v1138 = vpack.c.bf16 %v1022, %v1020
      %v1139 = vpack.c.bf16 %v1025, %v1023
      %v1140 = vpack.c.bf16 %v1026, %v1024
      %v1141 = vpack.c.bf16 %v1029, %v1027
      %v1142 = vpack.c.bf16 %v1030, %v1028
      %v1143 = vpack.c.bf16 %v1033, %v1031
      %v1144 = vpack.c.bf16 %v1034, %v1032
      %v1145 = vpack.c.bf16 %v1037, %v1035
      %v1146 = vpack.c.bf16 %v1038, %v1036
      %v1147 = vpack.c.bf16 %v1041, %v1039
      %v1148 = vpack.c.bf16 %v1042, %v1040
      %v1149 = vpack.c.bf16 %v1045, %v1043
      %v1150 = vpack.c.bf16 %v1046, %v1044
      %v1151 = vpack.c.bf16 %v1049, %v1047
      %v1152 = vpack.c.bf16 %v1050, %v1048
      %v1153 = vpack.c.bf16 %v1053, %v1051
      %v1154 = vpack.c.bf16 %v1054, %v1052
      %v1155 = vpack.c.bf16 %v1057, %v1055
      %v1156 = vpack.c.bf16 %v1058, %v1056
      %v1157 = vpack.c.bf16 %v1061, %v1059
      %v1158 = vpack.c.bf16 %v1062, %v1060
      %v1159 = vpack.c.bf16 %v1065, %v1063
      %v1160 = vpack.c.bf16 %v1066, %v1064
      %v1161 = vpack.c.bf16 %v1069, %v1067
      %v1162 = vpack.c.bf16 %v1070, %v1068
      %v1163 = vpack.c.bf16 %v1073, %v1071
      %v1164 = vpack.c.bf16 %v1074, %v1072
      %v1165 = vpack.c.bf16 %v1077, %v1075
      %v1166 = vpack.c.bf16 %v1078, %v1076
      %v1167 = vpack.c.bf16 %v1081, %v1079
      %v1168 = vpack.c.bf16 %v1082, %v1080
      %v1169 = vpack.c.bf16 %v1085, %v1083
      %v1170 = vpack.c.bf16 %v1086, %v1084
      %v1171 = vpack.c.bf16 %v1089, %v1087
      %v1172 = vpack.c.bf16 %v1090, %v1088
      %v1173 = vpack.c.bf16 %v1093, %v1091
      %v1174 = vpack.c.bf16 %v1094, %v1092
      %v1175 = vpack.c.bf16 %v1097, %v1095
      %v1176 = vpack.c.bf16 %v1098, %v1096
      %v1177 = vpack.c.bf16 %v1101, %v1099
      %v1178 = vpack.c.bf16 %v1102, %v1100
      %v1179 = vpack.c.bf16 %v1105, %v1103
      %v1180 = vpack.c.bf16 %v1106, %v1104
      %v1181 = vpack.c.bf16 %v1109, %v1107
      %v1182 = vpack.c.bf16 %v1110, %v1108
      %v1183 = vpack.c.bf16 %v1113, %v1111
      %v1184 = vpack.c.bf16 %v1114, %v1112
      %v1185 = vpack.c.bf16 %v1117, %v1115
      %v1186 = vpack.c.bf16 %v1118, %v1116
      %v1187 = vpack.c.bf16 %v1121, %v1119
      %v1188 = vpack.c.bf16 %v1122, %v1120
      %v1189 = vpack.c.bf16 %v1125, %v1123
      %v1190 = vpack.c.bf16 %v1126, %v1124
      %v1255 = vunpack.c.l.b16 %v1127
      %v1256 = vunpack.c.l.b16 %v1128
      %v1257 = vunpack.c.h.b16 %v1127
      %v1258 = vunpack.c.h.b16 %v1128
      %v1259 = vunpack.c.l.b16 %v1129
      %v1260 = vunpack.c.l.b16 %v1130
      %v1261 = vunpack.c.h.b16 %v1129
      %v1262 = vunpack.c.h.b16 %v1130
      %v1263 = vunpack.c.l.b16 %v1131
      %v1264 = vunpack.c.l.b16 %v1132
      %v1265 = vunpack.c.h.b16 %v1131
      %v1266 = vunpack.c.h.b16 %v1132
      %v1267 = vunpack.c.l.b16 %v1133
      %v1268 = vunpack.c.l.b16 %v1134
      %v1269 = vunpack.c.h.b16 %v1133
      %v1270 = vunpack.c.h.b16 %v1134
      %v1271 = vunpack.c.l.b16 %v1135
      %v1272 = vunpack.c.l.b16 %v1136
      %v1273 = vunpack.c.h.b16 %v1135
      %v1274 = vunpack.c.h.b16 %v1136
      %v1275 = vunpack.c.l.b16 %v1137
      %v1276 = vunpack.c.l.b16 %v1138
      %v1277 = vunpack.c.h.b16 %v1137
      %v1278 = vunpack.c.h.b16 %v1138
      %v1279 = vunpack.c.l.b16 %v1139
      %v1280 = vunpack.c.l.b16 %v1140
      %v1281 = vunpack.c.h.b16 %v1139
      %v1282 = vunpack.c.h.b16 %v1140
      %v1283 = vunpack.c.l.b16 %v1141
      %v1284 = vunpack.c.l.b16 %v1142
      %v1285 = vunpack.c.h.b16 %v1141
      %v1286 = vunpack.c.h.b16 %v1142
      %v1287 = vunpack.c.l.b16 %v1143
      %v1288 = vunpack.c.l.b16 %v1144
      %v1289 = vunpack.c.h.b16 %v1143
      %v1290 = vunpack.c.h.b16 %v1144
      %v1291 = vunpack.c.l.b16 %v1145
      %v1292 = vunpack.c.l.b16 %v1146
      %v1293 = vunpack.c.h.b16 %v1145
      %v1294 = vunpack.c.h.b16 %v1146
      %v1295 = vunpack.c.l.b16 %v1147
      %v1296 = vunpack.c.l.b16 %v1148
      %v1297 = vunpack.c.h.b16 %v1147
      %v1298 = vunpack.c.h.b16 %v1148
      %v1299 = vunpack.c.l.b16 %v1149
      %v1300 = vunpack.c.l.b16 %v1150
      %v1301 = vunpack.c.h.b16 %v1149
      %v1302 = vunpack.c.h.b16 %v1150
      %v1303 = vunpack.c.l.b16 %v1151
      %v1304 = vunpack.c.l.b16 %v1152
      %v1305 = vunpack.c.h.b16 %v1151
      %v1306 = vunpack.c.h.b16 %v1152
      %v1307 = vunpack.c.l.b16 %v1153
      %v1308 = vunpack.c.l.b16 %v1154
      %v1309 = vunpack.c.h.b16 %v1153
      %v1310 = vunpack.c.h.b16 %v1154
      %v1311 = vunpack.c.l.b16 %v1155
      %v1312 = vunpack.c.l.b16 %v1156
      %v1313 = vunpack.c.h.b16 %v1155
      %v1314 = vunpack.c.h.b16 %v1156
      %v1315 = vunpack.c.l.b16 %v1157
      %v1316 = vunpack.c.l.b16 %v1158
      %v1317 = vunpack.c.h.b16 %v1157
      %v1318 = vunpack.c.h.b16 %v1158
      %v1319 = vunpack.c.l.b16 %v1159
      %v1320 = vunpack.c.l.b16 %v1160
      %v1321 = vunpack.c.h.b16 %v1159
      %v1322 = vunpack.c.h.b16 %v1160
      %v1323 = vunpack.c.l.b16 %v1161
      %v1324 = vunpack.c.l.b16 %v1162
      %v1325 = vunpack.c.h.b16 %v1161
      %v1326 = vunpack.c.h.b16 %v1162
      %v1327 = vunpack.c.l.b16 %v1163
      %v1328 = vunpack.c.l.b16 %v1164
      %v1329 = vunpack.c.h.b16 %v1163
      %v1330 = vunpack.c.h.b16 %v1164
      %v1331 = vunpack.c.l.b16 %v1165
      %v1332 = vunpack.c.l.b16 %v1166
      %v1333 = vunpack.c.h.b16 %v1165
      %v1334 = vunpack.c.h.b16 %v1166
      %v1335 = vunpack.c.l.b16 %v1167
      %v1336 = vunpack.c.l.b16 %v1168
      %v1337 = vunpack.c.h.b16 %v1167
      %v1338 = vunpack.c.h.b16 %v1168
      %v1339 = vunpack.c.l.b16 %v1169
      %v1340 = vunpack.c.l.b16 %v1170
      %v1341 = vunpack.c.h.b16 %v1169
      %v1342 = vunpack.c.h.b16 %v1170
      %v1343 = vunpack.c.l.b16 %v1171
      %v1344 = vunpack.c.l.b16 %v1172
      %v1345 = vunpack.c.h.b16 %v1171
      %v1346 = vunpack.c.h.b16 %v1172
      %v1347 = vunpack.c.l.b16 %v1173
      %v1348 = vunpack.c.l.b16 %v1174
      %v1349 = vunpack.c.h.b16 %v1173
      %v1350 = vunpack.c.h.b16 %v1174
      %v1351 = vunpack.c.l.b16 %v1175
      %v1352 = vunpack.c.l.b16 %v1176
      %v1353 = vunpack.c.h.b16 %v1175
      %v1354 = vunpack.c.h.b16 %v1176
      %v1355 = vunpack.c.l.b16 %v1177
      %v1356 = vunpack.c.l.b16 %v1178
      %v1357 = vunpack.c.h.b16 %v1177
      %v1358 = vunpack.c.h.b16 %v1178
      %v1359 = vunpack.c.l.b16 %v1179
      %v1360 = vunpack.c.l.b16 %v1180
      %v1361 = vunpack.c.h.b16 %v1179
      %v1362 = vunpack.c.h.b16 %v1180
      %v1363 = vunpack.c.l.b16 %v1181
      %v1364 = vunpack.c.l.b16 %v1182
      %v1365 = vunpack.c.h.b16 %v1181
      %v1366 = vunpack.c.h.b16 %v1182
      %v1367 = vunpack.c.l.b16 %v1183
      %v1368 = vunpack.c.l.b16 %v1184
      %v1369 = vunpack.c.h.b16 %v1183
      %v1370 = vunpack.c.h.b16 %v1184
      %v1371 = vunpack.c.l.b16 %v1185
      %v1372 = vunpack.c.l.b16 %v1186
      %v1373 = vunpack.c.h.b16 %v1185
      %v1374 = vunpack.c.h.b16 %v1186
      %v1375 = vunpack.c.l.b16 %v1187
      %v1376 = vunpack.c.l.b16 %v1188
      %v1377 = vunpack.c.h.b16 %v1187
      %v1378 = vunpack.c.h.b16 %v1188
      %v1379 = vunpack.c.l.b16 %v1189
      %v1380 = vunpack.c.l.b16 %v1190
      %v1381 = vunpack.c.h.b16 %v1189
      %v1382 = vunpack.c.h.b16 %v1190
      %v1383 = vpack.c.b16 %v1256, %v1255
      %v1384 = vpack.c.b16 %v1258, %v1257
      %v1385 = vpack.c.b16 %v1260, %v1259
      %v1386 = vpack.c.b16 %v1262, %v1261
      %v1387 = vpack.c.b16 %v1264, %v1263
      %v1388 = vpack.c.b16 %v1266, %v1265
      %v1389 = vpack.c.b16 %v1268, %v1267
      %v1390 = vpack.c.b16 %v1270, %v1269
      %v1391 = vpack.c.b16 %v1272, %v1271
      %v1392 = vpack.c.b16 %v1274, %v1273
      %v1393 = vpack.c.b16 %v1276, %v1275
      %v1394 = vpack.c.b16 %v1278, %v1277
      %v1395 = vpack.c.b16 %v1280, %v1279
      %v1396 = vpack.c.b16 %v1282, %v1281
      %v1397 = vpack.c.b16 %v1284, %v1283
      %v1398 = vpack.c.b16 %v1286, %v1285
      %v1399 = vpack.c.b16 %v1288, %v1287
      %v1400 = vpack.c.b16 %v1290, %v1289
      %v1401 = vpack.c.b16 %v1292, %v1291
      %v1402 = vpack.c.b16 %v1294, %v1293
      %v1403 = vpack.c.b16 %v1296, %v1295
      %v1404 = vpack.c.b16 %v1298, %v1297
      %v1405 = vpack.c.b16 %v1300, %v1299
      %v1406 = vpack.c.b16 %v1302, %v1301
      %v1407 = vpack.c.b16 %v1304, %v1303
      %v1408 = vpack.c.b16 %v1306, %v1305
      %v1409 = vpack.c.b16 %v1308, %v1307
      %v1410 = vpack.c.b16 %v1310, %v1309
      %v1411 = vpack.c.b16 %v1312, %v1311
      %v1412 = vpack.c.b16 %v1314, %v1313
      %v1413 = vpack.c.b16 %v1316, %v1315
      %v1414 = vpack.c.b16 %v1318, %v1317
      %v1415 = vpack.c.b16 %v1320, %v1319
      %v1416 = vpack.c.b16 %v1322, %v1321
      %v1417 = vpack.c.b16 %v1324, %v1323
      %v1418 = vpack.c.b16 %v1326, %v1325
      %v1419 = vpack.c.b16 %v1328, %v1327
      %v1420 = vpack.c.b16 %v1330, %v1329
      %v1421 = vpack.c.b16 %v1332, %v1331
      %v1422 = vpack.c.b16 %v1334, %v1333
      %v1423 = vpack.c.b16 %v1336, %v1335
      %v1424 = vpack.c.b16 %v1338, %v1337
      %v1425 = vpack.c.b16 %v1340, %v1339
      %v1426 = vpack.c.b16 %v1342, %v1341
      %v1427 = vpack.c.b16 %v1344, %v1343
      %v1428 = vpack.c.b16 %v1346, %v1345
      %v1429 = vpack.c.b16 %v1348, %v1347
      %v1430 = vpack.c.b16 %v1350, %v1349
      %v1431 = vpack.c.b16 %v1352, %v1351
      %v1432 = vpack.c.b16 %v1354, %v1353
      %v1433 = vpack.c.b16 %v1356, %v1355
      %v1434 = vpack.c.b16 %v1358, %v1357
      %v1435 = vpack.c.b16 %v1360, %v1359
      %v1436 = vpack.c.b16 %v1362, %v1361
      %v1437 = vpack.c.b16 %v1364, %v1363
      %v1438 = vpack.c.b16 %v1366, %v1365
      %v1439 = vpack.c.b16 %v1368, %v1367
      %v1440 = vpack.c.b16 %v1370, %v1369
      %v1441 = vpack.c.b16 %v1372, %v1371
      %v1442 = vpack.c.b16 %v1374, %v1373
      %v1443 = vpack.c.b16 %v1376, %v1375
      %v1444 = vpack.c.b16 %v1378, %v1377
      %v1445 = vpack.c.b16 %v1380, %v1379
      %v1446 = vpack.c.b16 %v1382, %v1381
      %vm1511 = vcmask 1043456
      %vm1512 = vcmask 523268
      %vm1513 = vmor %vm1512, %vm1511
      %1514 = vst.msk [vmem:[%s237] sm:$0xff] %vm1513, %v1383
      %1515 = vst.msk [vmem:[%s237 + $0x8] sm:$0xff] %vm1513, %v1384
      %1516 = vst.msk [vmem:[%s237 + $0x10] sm:$0xff] %vm1513, %v1385
      %1517 = vst.msk [vmem:[%s237 + $0x18] sm:$0xff] %vm1513, %v1386
      %1518 = vst.msk [vmem:[%s237 + $0x20] sm:$0xff] %vm1513, %v1387
      %1519 = vst.msk [vmem:[%s237 + $0x28] sm:$0xff] %vm1513, %v1388
      %1520 = vst.msk [vmem:[%s237 + $0x30] sm:$0xff] %vm1513, %v1389
      %1521 = vst.msk [vmem:[%s237 + $0x38] sm:$0xff] %vm1513, %v1390
      %1522 = vst.msk [vmem:[%s237 + $0x40] sm:$0xff] %vm1513, %v1391
      %1523 = vst.msk [vmem:[%s237 + $0x48] sm:$0xff] %vm1513, %v1392
      %1524 = vst.msk [vmem:[%s237 + $0x50] sm:$0xff] %vm1513, %v1393
      %1525 = vst.msk [vmem:[%s237 + $0x58] sm:$0xff] %vm1513, %v1394
      %1526 = vst.msk [vmem:[%s237 + $0x60] sm:$0xff] %vm1513, %v1395
      %1527 = vst.msk [vmem:[%s237 + $0x68] sm:$0xff] %vm1513, %v1396
      %1528 = vst.msk [vmem:[%s237 + $0x70] sm:$0xff] %vm1513, %v1397
      %1529 = vst.msk [vmem:[%s237 + $0x78] sm:$0xff] %vm1513, %v1398
      %1530 = vst.msk [vmem:[%s237 + $0x80] sm:$0xff] %vm1513, %v1399
      %1531 = vst.msk [vmem:[%s237 + $0x88] sm:$0xff] %vm1513, %v1400
      %1532 = vst.msk [vmem:[%s237 + $0x90] sm:$0xff] %vm1513, %v1401
      %1533 = vst.msk [vmem:[%s237 + $0x98] sm:$0xff] %vm1513, %v1402
      %1534 = vst.msk [vmem:[%s237 + $0xa0] sm:$0xff] %vm1513, %v1403
      %1535 = vst.msk [vmem:[%s237 + $0xa8] sm:$0xff] %vm1513, %v1404
      %1536 = vst.msk [vmem:[%s237 + $0xb0] sm:$0xff] %vm1513, %v1405
      %1537 = vst.msk [vmem:[%s237 + $0xb8] sm:$0xff] %vm1513, %v1406
      %1538 = vst.msk [vmem:[%s237 + $0xc0] sm:$0xff] %vm1513, %v1407
      %1539 = vst.msk [vmem:[%s237 + $0xc8] sm:$0xff] %vm1513, %v1408
      %1540 = vst.msk [vmem:[%s237 + $0xd0] sm:$0xff] %vm1513, %v1409
      %1541 = vst.msk [vmem:[%s237 + $0xd8] sm:$0xff] %vm1513, %v1410
      %1542 = vst.msk [vmem:[%s237 + $0xe0] sm:$0xff] %vm1513, %v1411
      %1543 = vst.msk [vmem:[%s237 + $0xe8] sm:$0xff] %vm1513, %v1412
      %1544 = vst.msk [vmem:[%s237 + $0xf0] sm:$0xff] %vm1513, %v1413
      %1545 = vst.msk [vmem:[%s237 + $0xf8] sm:$0xff] %vm1513, %v1414
      %1546 = vst.msk [vmem:[%s237 + $0x100] sm:$0xff] %vm1513, %v1415
      %1547 = vst.msk [vmem:[%s237 + $0x108] sm:$0xff] %vm1513, %v1416
      %1548 = vst.msk [vmem:[%s237 + $0x110] sm:$0xff] %vm1513, %v1417
      %1549 = vst.msk [vmem:[%s237 + $0x118] sm:$0xff] %vm1513, %v1418
      %1550 = vst.msk [vmem:[%s237 + $0x120] sm:$0xff] %vm1513, %v1419
      %1551 = vst.msk [vmem:[%s237 + $0x128] sm:$0xff] %vm1513, %v1420
      %1552 = vst.msk [vmem:[%s237 + $0x130] sm:$0xff] %vm1513, %v1421
      %1553 = vst.msk [vmem:[%s237 + $0x138] sm:$0xff] %vm1513, %v1422
      %1554 = vst.msk [vmem:[%s237 + $0x140] sm:$0xff] %vm1513, %v1423
      %1555 = vst.msk [vmem:[%s237 + $0x148] sm:$0xff] %vm1513, %v1424
      %1556 = vst.msk [vmem:[%s237 + $0x150] sm:$0xff] %vm1513, %v1425
      %1557 = vst.msk [vmem:[%s237 + $0x158] sm:$0xff] %vm1513, %v1426
      %1558 = vst.msk [vmem:[%s237 + $0x160] sm:$0xff] %vm1513, %v1427
      %1559 = vst.msk [vmem:[%s237 + $0x168] sm:$0xff] %vm1513, %v1428
      %1560 = vst.msk [vmem:[%s237 + $0x170] sm:$0xff] %vm1513, %v1429
      %1561 = vst.msk [vmem:[%s237 + $0x178] sm:$0xff] %vm1513, %v1430
      %1562 = vst.msk [vmem:[%s237 + $0x180] sm:$0xff] %vm1513, %v1431
      %1563 = vst.msk [vmem:[%s237 + $0x188] sm:$0xff] %vm1513, %v1432
      %1564 = vst.msk [vmem:[%s237 + $0x190] sm:$0xff] %vm1513, %v1433
      %1565 = vst.msk [vmem:[%s237 + $0x198] sm:$0xff] %vm1513, %v1434
      %1566 = vst.msk [vmem:[%s237 + $0x1a0] sm:$0xff] %vm1513, %v1435
      %1567 = vst.msk [vmem:[%s237 + $0x1a8] sm:$0xff] %vm1513, %v1436
      %1568 = vst.msk [vmem:[%s237 + $0x1b0] sm:$0xff] %vm1513, %v1437
      %1569 = vst.msk [vmem:[%s237 + $0x1b8] sm:$0xff] %vm1513, %v1438
      %1570 = vst.msk [vmem:[%s237 + $0x1c0] sm:$0xff] %vm1513, %v1439
      %1571 = vst.msk [vmem:[%s237 + $0x1c8] sm:$0xff] %vm1513, %v1440
      %1572 = vst.msk [vmem:[%s237 + $0x1d0] sm:$0xff] %vm1513, %v1441
      %1573 = vst.msk [vmem:[%s237 + $0x1d8] sm:$0xff] %vm1513, %v1442
      %1574 = vst.msk [vmem:[%s237 + $0x1e0] sm:$0xff] %vm1513, %v1443
      %1575 = vst.msk [vmem:[%s237 + $0x1e8] sm:$0xff] %vm1513, %v1444
      %1576 = vst.msk [vmem:[%s237 + $0x1f0] sm:$0xff] %vm1513, %v1445
      %1577 = vst.msk [vmem:[%s237 + $0x1f8] sm:$0xff] %vm1513, %v1446
      %s1578 = smul.u32 64, %s18
      %s1579 = smul.u32 2, %s19
      %p1580 = scmp.lt.s32.totalorder %s1578, 191
      %s1581 = scalar_select %p1580, %s1578, 191
      %p1582 = scmp.lt.s32.totalorder %s1579, 1
      %s1583 = scalar_select %p1582, %s1579, 1
      %s1584 = smul.addr %s1581, 2
      %s1585 = sadd.s32 %s1583, %s1584
      %s1586 = smul.addr %s1585, 4
      %s1587 = scalar_lea.vmem %s3, %s1586
      // Predicated region
      $region33: #{tpu_custom_call.1} parent=31 // pred_check
        %p1588 = pneg %p124
      $region34: #{tpu_custom_call.1} parent=31 // pred_check_branch
        %1590 = sbr.rel (%p1588) target = $region36
      $region35: #{tpu_custom_call.1} parent=31 // pred_region
        %s1591 = smul.u32 64, %s18
        %s1592 = smul.u32 2, %s19
      $region36: #{tpu_custom_call.1} parent=31 // pred_fallthru
        _
    $region32: #{tpu_custom_call.1} parent=5 // pred_fallthru
      _
    %p1593 = scmp.le.s32.totalorder 2, %s9
    // Predicated region
    $region37: #{tpu_custom_call.1} parent=5 // pred_check
      %p1594 = pneg %p1593
    $region38: #{tpu_custom_call.1} parent=5 // pred_check_branch
      %1596 = sbr.rel (%p1594) target = $region40
    $region39: #{tpu_custom_call.1} parent=5 // pred_region
      %s1597 = ssub.s32 %s9, 2
      // Predicated region
      $region41: #{tpu_custom_call.1} parent=39 // pred_check
        %p1598 = pneg %p130
      $region42: #{tpu_custom_call.1} parent=39 // pred_check_branch
        %1600 = sbr.rel (%p1598) target = $region44
      $region43: #{tpu_custom_call.1} parent=39 // pred_region
        %s1601 = smul.u32 64, %s20
        %s1602 = smul.u32 2, %s21
        %p1603 = scmp.lt.s32.totalorder %s1601, 191
        %s1604 = scalar_select %p1603, %s1601, 191
        %p1605 = scmp.lt.s32.totalorder %s1602, 1
        %s1606 = scalar_select %p1605, %s1602, 1
        %s1607 = smul.addr %s1604, 2
        %s1608 = sadd.s32 %s1606, %s1607
        %s1609 = smul.addr %s1608, 4
        %s1610 = scalar_lea.vmem %s3, %s1609
      $region44: #{tpu_custom_call.1} parent=39 // pred_fallthru
        _
    $region40: #{tpu_custom_call.1} parent=5 // pred_fallthru
      _
  $region6: #{tpu_custom_call.1} parent=0 // loop_footer
    %s13 = sadd.s32 1, %s9
  $region7: #{tpu_custom_call.1} parent=0 // loop_footer_branch
    %8 = sbr.rel target = $region3
  $region8: #{tpu_custom_call.1} parent=0 // loop_exit
    _

</llo_original>
